<compile_context>
chip_gen: v5e
topology: v5e:2x2
jax: 0.10.0
libtpu: 0.0.40
codegen_flags: <defaults>
</compile_context>

<pallas_src>
import functools

import numpy as np
import jax
import jax.numpy as jnp
from jax.experimental import pallas as pl
from jax.experimental.pallas import tpu as pltpu


# --------------------------------------------------------------------------
# Kernel: dilated KxK conv for one batch image as a single im2col matmul,
#         with in-kernel zero padding, fused bias add, and a lane-dense
#         (Cout, Ho*Wo) output store.
# --------------------------------------------------------------------------
def _conv_kernel(x_ref, w_ref, b_ref, y_ref, *scratch,
                 H, W, Ho, Wo, KH, KW, stride, padding, dilation):
    # x_ref : (1, H, W, Cin)       bf16 unpadded input image (NHWC)
    # w_ref : (KH*KW*Cin, Cout)    bf16 weight, rows ordered (kh, kw, cin)
    # b_ref : (1, Cout)            f32 bias
    # y_ref : (1, Cout, Ho*Wo)     f32 output (channel-major, lane-dense)
    # scratch (iff padding > 0):   (H+2p, W+2p, Cin) bf16 VMEM pad buffer
    cin = x_ref.shape[-1]

    if padding > 0:
        xpad_ref = scratch[0]
        # Zero the halo, then drop the image into the interior (all in VMEM,
        # no XLA pad / extra HBM pass).
        xpad_ref[...] = jnp.zeros(xpad_ref.shape, xpad_ref.dtype)
        xpad_ref[padding:padding + H, padding:padding + W, :] = x_ref[0]
        xp = xpad_ref[...]                              # (Hp, Wp, Cin)
    else:
        xp = x_ref[0]                                   # (H, W, Cin)

    # im2col: lane-concatenate the KH*KW shifted slabs -> (Ho, Wo, KH*KW*Cin).
    slabs = []
    for kh in range(KH):
        for kw in range(KW):
            hs, ws = kh * dilation, kw * dilation
            if stride == 1:
                s = xp[hs:hs + Ho, ws:ws + Wo, :]
            else:  # strided window (not exercised by the demo; stride=1 there)
                s = jax.lax.slice(
                    xp, (hs, ws, 0),
                    (hs + (Ho - 1) * stride + 1, ws + (Wo - 1) * stride + 1, cin),
                    (stride, stride, 1))
            slabs.append(s)
    patch = jnp.concatenate(slabs, axis=-1).reshape(Ho * Wo, KH * KW * cin)

    # One MXU matmul with K = KH*KW*Cin; f32 accumulation; fused bias add.
    acc = jnp.dot(patch, w_ref[...], preferred_element_type=jnp.float32)
    acc = acc + b_ref[...]                              # (Ho*Wo, Cout) + (1, Cout)
    # Single on-chip f32 transpose -> (Cout, Ho*Wo): lane-dense unmasked stores
    # and no XLA output-transpose pass in the wrapper.
    y_ref[0] = acc.T


# --------------------------------------------------------------------------
# Wrapper: NCHW conv2d + bias via the Pallas kernel.
# --------------------------------------------------------------------------
def conv2d_bias_pallas(x_nchw, weight_oihw, bias, *, stride=1, padding=0, dilation=1):
    B, Cin, H, W = x_nchw.shape
    Cout, Cin_w, KH, KW = weight_oihw.shape
    assert Cin_w == Cin, (Cin_w, Cin)
    Ho = (H + 2 * padding - dilation * (KH - 1) - 1) // stride + 1
    Wo = (W + 2 * padding - dilation * (KW - 1) - 1) // stride + 1

    # NCHW -> NHWC fused with the bf16 cast (single XLA pass; halves the
    # feature DMA traffic into the kernel).
    x = jnp.transpose(x_nchw, (0, 2, 3, 1)).astype(jnp.bfloat16)
    # (Cout, Cin, KH, KW) -> (KH, KW, Cin, Cout) -> (KH*KW*Cin, Cout),
    # matching the (kh, kw, cin) im2col row ordering used in the kernel.
    w = jnp.transpose(weight_oihw, (2, 3, 1, 0)).reshape(KH * KW * Cin, Cout)
    w = w.astype(jnp.bfloat16)
    if bias is None:                                    # if_bias=False case
        bias = jnp.zeros((Cout,), jnp.float32)
    b = bias.reshape(1, Cout).astype(jnp.float32)

    Hp, Wp = H + 2 * padding, W + 2 * padding
    scratch_shapes = []
    if padding > 0:
        scratch_shapes.append(pltpu.VMEM((Hp, Wp, Cin), jnp.bfloat16))

    kernel = functools.partial(
        _conv_kernel, H=H, W=W, Ho=Ho, Wo=Wo, KH=KH, KW=KW,
        stride=stride, padding=padding, dilation=dilation)

    y = pl.pallas_call(
        kernel,
        grid=(B,),
        in_specs=[
            pl.BlockSpec((1, H, W, Cin), lambda bi: (bi, 0, 0, 0)),
            pl.BlockSpec((KH * KW * Cin, Cout), lambda bi: (0, 0)),
            pl.BlockSpec((1, Cout), lambda bi: (0, 0)),
        ],
        out_specs=pl.BlockSpec((1, Cout, Ho * Wo), lambda bi: (bi, 0, 0)),
        out_shape=jax.ShapeDtypeStruct((B, Cout, Ho * Wo), jnp.float32),
        scratch_shapes=scratch_shapes,
        compiler_params=pltpu.CompilerParams(
            dimension_semantics=("parallel",)),  # batch split across v7x's 2 TCs
    )(x, w, b)
    # Trailing-dim split only: pure metadata reshape, no HBM transpose pass.
    return y.reshape(B, Cout, Ho, Wo)


def conv_forward(x_nchw, m, weight_oihw, bias, *, stride=1, padding=0, dilation=1):
    """Forward of the `Conv` module: (x, m) -> (conv(x) + bias, m)."""
    y = conv2d_bias_pallas(x_nchw, weight_oihw, bias,
                           stride=stride, padding=padding, dilation=dilation)
    return y, m                                         # mask passes through untouched


# --------------------------------------------------------------------------
# Parameter init matching Conv.__init__ shapes (deterministic).
# --------------------------------------------------------------------------
def init_conv_params(key, in_channels, out_channels, kernel_size):
    # kaiming_normal_(mode='fan_out', nonlinearity='leaky_relu') => std = sqrt(2/fan_out)
    fan_out = out_channels * kernel_size * kernel_size
    std = np.sqrt(2.0) / np.sqrt(fan_out)
    w = std * jax.random.normal(
        key, (out_channels, in_channels, kernel_size, kernel_size), dtype=jnp.float32)
    b = jnp.zeros((out_channels,), jnp.float32)         # bias parameter, zero-init
    return w, b


if __name__ == "__main__":
    B, Cin, H, W = 2, 4, 16, 16
    Cout, K = 32, 3
    stride, padding, dilation = 1, 1, 1

    key = jax.random.PRNGKey(0)
    kx, km, kw = jax.random.split(key, 3)
    x = jax.random.normal(kx, (B, Cin, H, W), dtype=jnp.float32)
    m = (jax.random.uniform(km, (B, 1, H, W)) > 0.3).astype(jnp.float32)
    weight, bias = init_conv_params(kw, Cin, Cout, K)

    fwd = jax.jit(functools.partial(conv_forward, stride=stride,
                                    padding=padding, dilation=dilation))
    y, m_out = fwd(x, m, weight, bias)
    jax.block_until_ready((y, m_out))

    # Reference check (f32 XLA conv; tolerance covers the bf16 MXU inputs).
    ref = jax.lax.conv_general_dilated(
        x, weight, window_strides=(stride, stride),
        padding=((padding, padding), (padding, padding)),
        rhs_dilation=(dilation, dilation),
        dimension_numbers=("NCHW", "OIHW", "NCHW"),
    ) + bias.reshape(1, Cout, 1, 1)
    np.testing.assert_allclose(np.asarray(y), np.asarray(ref), atol=5e-2, rtol=0)
    np.testing.assert_array_equal(np.asarray(m_out), np.asarray(m))
    assert y.shape == (B, Cout, H, W), y.shape
    assert m_out.shape == (B, 1, H, W), m_out.shape
    print("KERNEL_OK")
</pallas_src>

<mosaic_0001>
module attributes {stable_mosaic.version = 11 : i64} {
  func.func @_conv_kernel(%arg0: i32, %arg1: memref<1x16x16x4xbf16, #tpu.memory_space<vmem>>, %arg2: memref<36x32xbf16, #tpu.memory_space<vmem>>, %arg3: memref<1x32xf32, #tpu.memory_space<vmem>>, %arg4: memref<1x32x256xf32, #tpu.memory_space<vmem>>, %arg5: memref<18x18x4xbf16, #tpu.memory_space<vmem>>) attributes {dimension_semantics = [#tpu.dimension_semantics<parallel>], iteration_bounds = array<i64: 2>, scalar_prefetch = 0 : i64, scratch_operands = 1 : i64, tpu.core_type = #tpu.core_type<tc>, window_params = [{transform_indices = @transform_0, window_bounds = array<i64: 1, 16, 16, 4>}, {pipeline_mode = #tpu.pipeline_mode<synchronous>, transform_indices = @transform_1, window_bounds = array<i64: 36, 32>}, {pipeline_mode = #tpu.pipeline_mode<synchronous>, transform_indices = @transform_2, window_bounds = array<i64: 1, 32>}, {transform_indices = @transform_3, window_bounds = array<i64: 1, 32, 256>}]} {
    %cst = arith.constant 0.000000e+00 : bf16
    %0 = vector.broadcast %cst : bf16 to vector<18x18x4xbf16>
    %c0 = arith.constant 0 : index
    %c0_0 = arith.constant 0 : index
    %c0_1 = arith.constant 0 : index
    %1 = vector.load %arg5[%c0, %c0_0, %c0_1] : memref<18x18x4xbf16, #tpu.memory_space<vmem>>, vector<18x18x4xbf16>
    tpu.vector_store %arg5[%c0, %c0_0, %c0_1], %0 {strides = array<i32>} : memref<18x18x4xbf16, #tpu.memory_space<vmem>>, vector<18x18x4xbf16>,
    %c0_2 = arith.constant 0 : index
    %c0_3 = arith.constant 0 : index
    %c0_4 = arith.constant 0 : index
    %c0_5 = arith.constant 0 : index
    %2 = vector.load %arg1[%c0_2, %c0_3, %c0_4, %c0_5] : memref<1x16x16x4xbf16, #tpu.memory_space<vmem>>, vector<1x16x16x4xbf16>
    %3 = vector.shape_cast %2 : vector<1x16x16x4xbf16> to vector<16x16x4xbf16>
    %c1 = arith.constant 1 : index
    %c1_6 = arith.constant 1 : index
    %c0_7 = arith.constant 0 : index
    %4 = vector.load %arg5[%c1, %c1_6, %c0_7] : memref<18x18x4xbf16, #tpu.memory_space<vmem>>, vector<16x16x4xbf16>
    tpu.vector_store %arg5[%c1, %c1_6, %c0_7], %3 {strides = array<i32>} : memref<18x18x4xbf16, #tpu.memory_space<vmem>>, vector<16x16x4xbf16>,
    %c0_8 = arith.constant 0 : index
    %c0_9 = arith.constant 0 : index
    %c0_10 = arith.constant 0 : index
    %5 = vector.load %arg5[%c0_8, %c0_9, %c0_10] : memref<18x18x4xbf16, #tpu.memory_space<vmem>>, vector<18x18x4xbf16>
    %6 = vector.extract_strided_slice %5 {offsets = [0, 0, 0], sizes = [16, 16, 4], strides = [1, 1, 1]} : vector<18x18x4xbf16> to vector<16x16x4xbf16>
    %7 = vector.extract_strided_slice %5 {offsets = [0, 1, 0], sizes = [16, 16, 4], strides = [1, 1, 1]} : vector<18x18x4xbf16> to vector<16x16x4xbf16>
    %8 = vector.extract_strided_slice %5 {offsets = [0, 2, 0], sizes = [16, 16, 4], strides = [1, 1, 1]} : vector<18x18x4xbf16> to vector<16x16x4xbf16>
    %9 = vector.extract_strided_slice %5 {offsets = [1, 0, 0], sizes = [16, 16, 4], strides = [1, 1, 1]} : vector<18x18x4xbf16> to vector<16x16x4xbf16>
    %10 = vector.extract_strided_slice %5 {offsets = [1, 1, 0], sizes = [16, 16, 4], strides = [1, 1, 1]} : vector<18x18x4xbf16> to vector<16x16x4xbf16>
    %11 = vector.extract_strided_slice %5 {offsets = [1, 2, 0], sizes = [16, 16, 4], strides = [1, 1, 1]} : vector<18x18x4xbf16> to vector<16x16x4xbf16>
    %12 = vector.extract_strided_slice %5 {offsets = [2, 0, 0], sizes = [16, 16, 4], strides = [1, 1, 1]} : vector<18x18x4xbf16> to vector<16x16x4xbf16>
    %13 = vector.extract_strided_slice %5 {offsets = [2, 1, 0], sizes = [16, 16, 4], strides = [1, 1, 1]} : vector<18x18x4xbf16> to vector<16x16x4xbf16>
    %14 = vector.extract_strided_slice %5 {offsets = [2, 2, 0], sizes = [16, 16, 4], strides = [1, 1, 1]} : vector<18x18x4xbf16> to vector<16x16x4xbf16>
    %15 = tpu.concatenate %6, %7, %8, %9, %10, %11, %12, %13, %14 in 2 : vector<16x16x4xbf16>, vector<16x16x4xbf16>, vector<16x16x4xbf16>, vector<16x16x4xbf16>, vector<16x16x4xbf16>, vector<16x16x4xbf16>, vector<16x16x4xbf16>, vector<16x16x4xbf16>, vector<16x16x4xbf16> -> vector<16x16x36xbf16>
    %16 = vector.shape_cast %15 : vector<16x16x36xbf16> to vector<256x36xbf16>
    %c0_11 = arith.constant 0 : index
    %c0_12 = arith.constant 0 : index
    %17 = vector.load %arg2[%c0_11, %c0_12] : memref<36x32xbf16, #tpu.memory_space<vmem>>, vector<36x32xbf16>
    %cst_13 = arith.constant dense<0.000000e+00> : vector<256x32xf32>
    %18 = tpu.matmul %16, %17, %cst_13 {dimension_numbers = #tpu.dot_dimension_numbers<[1], [0], [0], [1], [0, 0, 1, 1], [], []>} : vector<256x36xbf16>, vector<36x32xbf16>, vector<256x32xf32> -> vector<256x32xf32>
    %c0_14 = arith.constant 0 : index
    %c0_15 = arith.constant 0 : index
    %19 = vector.load %arg3[%c0_14, %c0_15] : memref<1x32xf32, #tpu.memory_space<vmem>>, vector<1x32xf32>
    %20 = vector.broadcast %19 : vector<1x32xf32> to vector<256x32xf32>
    %21 = arith.addf %18, %20 : vector<256x32xf32>
    %22 = tpu.transpose %21, [1, 0] : vector<256x32xf32> -> vector<32x256xf32>
    %c0_16 = arith.constant 0 : index
    %c0_17 = arith.constant 0 : index
    %c0_18 = arith.constant 0 : index
    %23 = vector.load %arg4[%c0_16, %c0_17, %c0_18] : memref<1x32x256xf32, #tpu.memory_space<vmem>>, vector<1x32x256xf32>
    %24 = vector.shape_cast %23 : vector<1x32x256xf32> to vector<32x256xf32>
    %25 = vector.shape_cast %22 : vector<32x256xf32> to vector<1x32x256xf32>
    tpu.vector_store %arg4[%c0_16, %c0_17, %c0_18], %25 {strides = array<i32>} : memref<1x32x256xf32, #tpu.memory_space<vmem>>, vector<1x32x256xf32>,
    return
  }
  func.func @transform_0(%arg0: i32) -> (i32, i32, i32, i32) {
    %c0_i32 = arith.constant 0 : i32
    %c0_i32_0 = arith.constant 0 : i32
    %c0_i32_1 = arith.constant 0 : i32
    %c0_i32_2 = arith.constant 0 : i32
    return %arg0, %c0_i32, %c0_i32_0, %c0_i32_1 : i32, i32, i32, i32
  }
  func.func @transform_1(%arg0: i32) -> (i32, i32) {
    %c0_i32 = arith.constant 0 : i32
    %c0_i32_0 = arith.constant 0 : i32
    %c0_i32_1 = arith.constant 0 : i32
    return %c0_i32, %c0_i32_0 : i32, i32
  }
  func.func @transform_2(%arg0: i32) -> (i32, i32) {
    %c0_i32 = arith.constant 0 : i32
    %c0_i32_0 = arith.constant 0 : i32
    %c0_i32_1 = arith.constant 0 : i32
    return %c0_i32, %c0_i32_0 : i32, i32
  }
  func.func @transform_3(%arg0: i32) -> (i32, i32, i32) {
    %c0_i32 = arith.constant 0 : i32
    %c0_i32_0 = arith.constant 0 : i32
    %c0_i32_1 = arith.constant 0 : i32
    return %arg0, %c0_i32, %c0_i32_0 : i32, i32, i32
  }
}

</mosaic_0001>

<llo_original>
// kernel: conv_forward.1
$region0: #{conv_forward.1}
  #allocation0 [shape = 'u32[]', space=smem, size = 0x4, offset = 0x4, fixed_abs, tag = 'smem constant byte address 0x4 - core index']
  #allocation1 [shape = 'u32[72,128]{1,0:T(1,128)}', space=vmem, size = 0x9000, scoped, tag = 'internal scratch']
  #allocation2 [shape = 'bf16[18,18,4]{2,1,0:T(8,128)(2,1)}', space=vmem, size = 0x1b000, scoped, tag = 'scratch operand']
  %s0 = inlined_call_operand.vmem [shape: bf16[2,16,16,4], index: 0, kind: input, shape index: {}]
  %s1 = inlined_call_operand.vmem [shape: bf16[36,32], index: 1, kind: input, shape index: {}]
  %s2 = inlined_call_operand.vmem [shape: f32[1,32], index: 2, kind: input, shape index: {}]
  %s3 = inlined_call_operand.vmem [shape: f32[2,32,256], index: 3, kind: output, shape index: {}]
  %s4 = sld [smem:[#allocation0]]
  $region45: #{conv_forward.1} parent=0
    _
  %s6 = ssub.s32 1, %s4
  %s7 = scalar_select 0, %s6, %s4
  loop: start=0, step=1, limit=4
  $region2: #{conv_forward.1} parent=0 // loop_pre_header
    _
  $region3: #{conv_forward.1} parent=0 // loop_header
    %s9 = sphi 0, %s13
    %p10 = scmp.ge.s32.totalorder %s9, 4
    %s19 = sphi 0, %s21
    %s22 = sphi 0, %s19
    %s23 = sphi 0, %s22
    %s39 = sphi 0, %s23
    %s43 = sphi 0, %s43
    %s45 = sphi 0, %s43
    %s46 = sphi 0, %s45
    %s60 = sphi 0, %s46
    %s64 = sphi 0, %s64
    %s66 = sphi 0, %s64
    %s67 = sphi 0, %s66
    %s81 = sphi 0, %s67
    %s87 = sphi 0, %s89
    %s90 = sphi 0, %s87
    %s91 = sphi 0, %s90
    %s107 = sphi 0, %s91
  $region4: #{conv_forward.1} parent=0 // loop_header_branch
    %12 = sbr.rel (%p10) target = $region8
  $region5: #{conv_forward.1} parent=0 // loop_body
    %s14 = ssub.s32 %s9, 1
    %s15 = ssub.s32 %s9, 2
    %s16 = sadd.s32 %s9, 1
    %s17 = ssub.s32 %s9, %s16
    %p18 = scmp.eq.s32.totalorder %s17, 0
    %s20 = sadd.s32 %s19, 1
    %s21 = scalar_select %p18, %s19, %s20
    %p24 = pneg %p18
    %p25 = scmp.eq.s32.totalorder %s9, 1
    %p26 = por %p24, %p25
    %p27 = scmp.ne.s32.totalorder %s19, %s22
    %p28 = scmp.eq.s32.totalorder %s9, 0
    %p29 = por %p27, %p28
    %p30 = scmp.ne.s32.totalorder %s19, %s22
    %p31 = scmp.eq.s32.totalorder %s14, 1
    %p32 = por %p30, %p31
    %p33 = scmp.ne.s32.totalorder %s22, %s23
    %p34 = scmp.eq.s32.totalorder %s14, 0
    %p35 = por %p33, %p34
    %p36 = scmp.ne.s32.totalorder %s22, %s23
    %p37 = scmp.eq.s32.totalorder %s15, 1
    %p38 = por %p36, %p37
    %p40 = scmp.ne.s32.totalorder %s23, %s39
    %p41 = scmp.eq.s32.totalorder %s15, 0
    %p42 = por %p40, %p41
    %s44 = sadd.s32 %s43, 1
    %p47 = scmp.eq.s32.totalorder %s9, 1
    %p48 = scmp.ne.s32.totalorder %s43, %s45
    %p49 = scmp.eq.s32.totalorder %s9, 0
    %p50 = por %p48, %p49
    %p51 = scmp.ne.s32.totalorder %s43, %s45
    %p52 = scmp.eq.s32.totalorder %s14, 1
    %p53 = por %p51, %p52
    %p54 = scmp.ne.s32.totalorder %s45, %s46
    %p55 = scmp.eq.s32.totalorder %s14, 0
    %p56 = por %p54, %p55
    %p57 = scmp.ne.s32.totalorder %s45, %s46
    %p58 = scmp.eq.s32.totalorder %s15, 1
    %p59 = por %p57, %p58
    %p61 = scmp.ne.s32.totalorder %s46, %s60
    %p62 = scmp.eq.s32.totalorder %s15, 0
    %p63 = por %p61, %p62
    %s65 = sadd.s32 %s64, 1
    %p68 = scmp.eq.s32.totalorder %s9, 1
    %p69 = scmp.ne.s32.totalorder %s64, %s66
    %p70 = scmp.eq.s32.totalorder %s9, 0
    %p71 = por %p69, %p70
    %p72 = scmp.ne.s32.totalorder %s64, %s66
    %p73 = scmp.eq.s32.totalorder %s14, 1
    %p74 = por %p72, %p73
    %p75 = scmp.ne.s32.totalorder %s66, %s67
    %p76 = scmp.eq.s32.totalorder %s14, 0
    %p77 = por %p75, %p76
    %p78 = scmp.ne.s32.totalorder %s66, %s67
    %p79 = scmp.eq.s32.totalorder %s15, 1
    %p80 = por %p78, %p79
    %p82 = scmp.ne.s32.totalorder %s67, %s81
    %p83 = scmp.eq.s32.totalorder %s15, 0
    %p84 = por %p82, %p83
    %s85 = ssub.s32 %s9, %s16
    %p86 = scmp.eq.s32.totalorder %s85, 0
    %s88 = sadd.s32 %s87, 1
    %s89 = scalar_select %p86, %s87, %s88
    %p92 = pneg %p86
    %p93 = scmp.eq.s32.totalorder %s9, 1
    %p94 = por %p92, %p93
    %p95 = scmp.ne.s32.totalorder %s87, %s90
    %p96 = scmp.eq.s32.totalorder %s9, 0
    %p97 = por %p95, %p96
    %p98 = scmp.ne.s32.totalorder %s87, %s90
    %p99 = scmp.eq.s32.totalorder %s14, 1
    %p100 = por %p98, %p99
    %p101 = scmp.ne.s32.totalorder %s90, %s91
    %p102 = scmp.eq.s32.totalorder %s14, 0
    %p103 = por %p101, %p102
    %p104 = scmp.ne.s32.totalorder %s90, %s91
    %p105 = scmp.eq.s32.totalorder %s15, 1
    %p106 = por %p104, %p105
    %p108 = scmp.ne.s32.totalorder %s91, %s107
    %p109 = scmp.eq.s32.totalorder %s15, 0
    %p110 = por %p108, %p109
    %p111 = scmp.le.s32.totalorder 1, %s9
    %p112 = scmp.lt.s32.totalorder %s9, 3
    %p113 = pnand %p111, %p112
    %p114 = pneg %p113
    // Predicated region
    $region9: #{conv_forward.1} parent=5 // pred_check
      _
    $region10: #{conv_forward.1} parent=5 // pred_check_branch
      %116 = sbr.rel (%p113) target = $region12
    $region11: #{conv_forward.1} parent=5 // pred_region
      %s117 = ssub.s32 %s9, 1
      // Predicated region
      $region13: #{conv_forward.1} parent=11 // pred_check
        %p118 = pneg %p56
      $region14: #{conv_forward.1} parent=11 // pred_check_branch
        %120 = sbr.rel (%p118) target = $region16
      $region15: #{conv_forward.1} parent=11 // pred_region
        _
      $region16: #{conv_forward.1} parent=11 // pred_fallthru
        _
      // Predicated region
      $region17: #{conv_forward.1} parent=11 // pred_check
        %p121 = pneg %p77
      $region18: #{conv_forward.1} parent=11 // pred_check_branch
        %123 = sbr.rel (%p121) target = $region20
      $region19: #{conv_forward.1} parent=11 // pred_region
        _
      $region20: #{conv_forward.1} parent=11 // pred_fallthru
        _
    $region12: #{conv_forward.1} parent=5 // pred_fallthru
      _
    %p124 = scmp.lt.s32.totalorder %s9, 2
    // Predicated region
    $region21: #{conv_forward.1} parent=5 // pred_check
      %p125 = pneg %p124
    $region22: #{conv_forward.1} parent=5 // pred_check_branch
      %127 = sbr.rel (%p125) target = $region24
    $region23: #{conv_forward.1} parent=5 // pred_region
      // Predicated region
      $region25: #{conv_forward.1} parent=23 // pred_check
        %p128 = pneg %p29
      $region26: #{conv_forward.1} parent=23 // pred_check_branch
        %130 = sbr.rel (%p128) target = $region28
      $region27: #{conv_forward.1} parent=23 // pred_region
        %p131 = scmp.lt.s32.totalorder %s9, 1
        %s132 = scalar_select %p131, %s9, 1
        %s133 = smul.addr %s132, 32
        %s134 = smul.addr %s133, 4
        %s135 = scalar_lea.vmem %s0, %s134
      $region28: #{conv_forward.1} parent=23 // pred_fallthru
        _
    $region24: #{conv_forward.1} parent=5 // pred_fallthru
      _
    %p136 = scmp.le.s32.totalorder 1, %s9
    %p137 = scmp.lt.s32.totalorder %s9, 3
    %p138 = pnand %p136, %p137
    %p139 = pneg %p138
    // Predicated region
    $region29: #{conv_forward.1} parent=5 // pred_check
      _
    $region30: #{conv_forward.1} parent=5 // pred_check_branch
      %141 = sbr.rel (%p138) target = $region32
    $region31: #{conv_forward.1} parent=5 // pred_region
      %s142 = ssub.s32 %s9, 1
      %p143 = scmp.lt.s32.totalorder %s14, 1
      %s144 = scalar_select %p143, %s14, 1
      %s145 = smul.addr %s144, 32
      %s146 = smul.addr %s145, 4
      %s147 = scalar_lea.vmem %s0, %s146
      %p148 = pneg %p35
      %p149 = pneg %p32
      %p150 = pneg %p56
      %p151 = pneg %p53
      %p152 = pneg %p77
      %p153 = pneg %p74
      %p154 = pneg %p103
      %p155 = pneg %p100
      %p156 = scmp.lt.s32.totalorder %s14, 1
      %s157 = scalar_select %p156, %s14, 1
      %s158 = smul.addr %s157, 8
      %s159 = smul.addr %s158, 8
      %s160 = scalar_lea.vmem %s3, %s159
      %p161 = scmp.lt.s32.totalorder %s14, 1
      %s162 = scalar_select %p161, %s14, 1
      %s163 = smul.addr %s162, 32
      %s164 = smul.addr %s163, 4
      %s165 = scalar_lea.vmem %s0, %s164
      %p166 = scmp.lt.s32.totalorder %s14, 1
      %s167 = scalar_select %p166, %s14, 1
      %s168 = smul.addr %s167, 8
      %s169 = smul.addr %s168, 8
      %s170 = scalar_lea.vmem %s3, %s169
      %vm172 = vcmask 27648
      %173 = vst.msk [vmem:[#allocation2] sm:$0xf] %vm172, 0
      %174 = vst.msk [vmem:[#allocation2 + $0x4] sm:$0xf] %vm172, 0
      %vm175 = vcmask 24576
      %176 = vst.msk [vmem:[#allocation2 + $0x8] sm:$0x1] %vm175, 0
      %177 = vst.msk [vmem:[#allocation2 + $0xc] sm:$0xf] %vm172, 0
      %178 = vst.msk [vmem:[#allocation2 + $0x10] sm:$0xf] %vm172, 0
      %179 = vst.msk [vmem:[#allocation2 + $0x14] sm:$0x1] %vm175, 0
      %180 = vst.msk [vmem:[#allocation2 + $0x18] sm:$0xf] %vm172, 0
      %181 = vst.msk [vmem:[#allocation2 + $0x1c] sm:$0xf] %vm172, 0
      %182 = vst.msk [vmem:[#allocation2 + $0x20] sm:$0x1] %vm175, 0
      %183 = vst.msk [vmem:[#allocation2 + $0x24] sm:$0xf] %vm172, 0
      %184 = vst.msk [vmem:[#allocation2 + $0x28] sm:$0xf] %vm172, 0
      %185 = vst.msk [vmem:[#allocation2 + $0x2c] sm:$0x1] %vm175, 0
      %186 = vst.msk [vmem:[#allocation2 + $0x30] sm:$0xf] %vm172, 0
      %187 = vst.msk [vmem:[#allocation2 + $0x34] sm:$0xf] %vm172, 0
      %188 = vst.msk [vmem:[#allocation2 + $0x38] sm:$0x1] %vm175, 0
      %189 = vst.msk [vmem:[#allocation2 + $0x3c] sm:$0xf] %vm172, 0
      %190 = vst.msk [vmem:[#allocation2 + $0x40] sm:$0xf] %vm172, 0
      %191 = vst.msk [vmem:[#allocation2 + $0x44] sm:$0x1] %vm175, 0
      %192 = vst.msk [vmem:[#allocation2 + $0x48] sm:$0xf] %vm172, 0
      %193 = vst.msk [vmem:[#allocation2 + $0x4c] sm:$0xf] %vm172, 0
      %194 = vst.msk [vmem:[#allocation2 + $0x50] sm:$0x1] %vm175, 0
      %195 = vst.msk [vmem:[#allocation2 + $0x54] sm:$0xf] %vm172, 0
      %196 = vst.msk [vmem:[#allocation2 + $0x58] sm:$0xf] %vm172, 0
      %197 = vst.msk [vmem:[#allocation2 + $0x5c] sm:$0x1] %vm175, 0
      %198 = vst.msk [vmem:[#allocation2 + $0x60] sm:$0xf] %vm172, 0
      %199 = vst.msk [vmem:[#allocation2 + $0x64] sm:$0xf] %vm172, 0
      %200 = vst.msk [vmem:[#allocation2 + $0x68] sm:$0x1] %vm175, 0
      %201 = vst.msk [vmem:[#allocation2 + $0x6c] sm:$0xf] %vm172, 0
      %202 = vst.msk [vmem:[#allocation2 + $0x70] sm:$0xf] %vm172, 0
      %203 = vst.msk [vmem:[#allocation2 + $0x74] sm:$0x1] %vm175, 0
      %204 = vst.msk [vmem:[#allocation2 + $0x78] sm:$0xf] %vm172, 0
      %205 = vst.msk [vmem:[#allocation2 + $0x7c] sm:$0xf] %vm172, 0
      %206 = vst.msk [vmem:[#allocation2 + $0x80] sm:$0x1] %vm175, 0
      %207 = vst.msk [vmem:[#allocation2 + $0x84] sm:$0xf] %vm172, 0
      %208 = vst.msk [vmem:[#allocation2 + $0x88] sm:$0xf] %vm172, 0
      %209 = vst.msk [vmem:[#allocation2 + $0x8c] sm:$0x1] %vm175, 0
      %210 = vst.msk [vmem:[#allocation2 + $0x90] sm:$0xf] %vm172, 0
      %211 = vst.msk [vmem:[#allocation2 + $0x94] sm:$0xf] %vm172, 0
      %212 = vst.msk [vmem:[#allocation2 + $0x98] sm:$0x1] %vm175, 0
      %213 = vst.msk [vmem:[#allocation2 + $0x9c] sm:$0xf] %vm172, 0
      %214 = vst.msk [vmem:[#allocation2 + $0xa0] sm:$0xf] %vm172, 0
      %215 = vst.msk [vmem:[#allocation2 + $0xa4] sm:$0x1] %vm175, 0
      %216 = vst.msk [vmem:[#allocation2 + $0xa8] sm:$0xf] %vm172, 0
      %217 = vst.msk [vmem:[#allocation2 + $0xac] sm:$0xf] %vm172, 0
      %218 = vst.msk [vmem:[#allocation2 + $0xb0] sm:$0x1] %vm175, 0
      %219 = vst.msk [vmem:[#allocation2 + $0xb4] sm:$0xf] %vm172, 0
      %220 = vst.msk [vmem:[#allocation2 + $0xb8] sm:$0xf] %vm172, 0
      %221 = vst.msk [vmem:[#allocation2 + $0xbc] sm:$0x1] %vm175, 0
      %222 = vst.msk [vmem:[#allocation2 + $0xc0] sm:$0xf] %vm172, 0
      %223 = vst.msk [vmem:[#allocation2 + $0xc4] sm:$0xf] %vm172, 0
      %224 = vst.msk [vmem:[#allocation2 + $0xc8] sm:$0x1] %vm175, 0
      %225 = vst.msk [vmem:[#allocation2 + $0xcc] sm:$0xf] %vm172, 0
      %226 = vst.msk [vmem:[#allocation2 + $0xd0] sm:$0xf] %vm172, 0
      %227 = vst.msk [vmem:[#allocation2 + $0xd4] sm:$0x1] %vm175, 0
      %v228 = vld [vmem:[%s165] sm:$0xf]
      %v229 = vld [vmem:[%s165 + $0x4] sm:$0xf]
      %v230 = vld [vmem:[%s165 + $0x8] sm:$0xf]
      %v231 = vld [vmem:[%s165 + $0xc] sm:$0xf]
      %v232 = vld [vmem:[%s165 + $0x10] sm:$0xf]
      %v233 = vld [vmem:[%s165 + $0x14] sm:$0xf]
      %v234 = vld [vmem:[%s165 + $0x18] sm:$0xf]
      %v235 = vld [vmem:[%s165 + $0x1c] sm:$0xf]
      %v236 = vld [vmem:[%s165 + $0x20] sm:$0xf]
      %v237 = vld [vmem:[%s165 + $0x24] sm:$0xf]
      %v238 = vld [vmem:[%s165 + $0x28] sm:$0xf]
      %v239 = vld [vmem:[%s165 + $0x2c] sm:$0xf]
      %v240 = vld [vmem:[%s165 + $0x30] sm:$0xf]
      %v241 = vld [vmem:[%s165 + $0x34] sm:$0xf]
      %v242 = vld [vmem:[%s165 + $0x38] sm:$0xf]
      %v243 = vld [vmem:[%s165 + $0x3c] sm:$0xf]
      %v244 = vld [vmem:[%s165 + $0x40] sm:$0xf]
      %v245 = vld [vmem:[%s165 + $0x44] sm:$0xf]
      %v246 = vld [vmem:[%s165 + $0x48] sm:$0xf]
      %v247 = vld [vmem:[%s165 + $0x4c] sm:$0xf]
      %v248 = vld [vmem:[%s165 + $0x50] sm:$0xf]
      %v249 = vld [vmem:[%s165 + $0x54] sm:$0xf]
      %v250 = vld [vmem:[%s165 + $0x58] sm:$0xf]
      %v251 = vld [vmem:[%s165 + $0x5c] sm:$0xf]
      %v252 = vld [vmem:[%s165 + $0x60] sm:$0xf]
      %v253 = vld [vmem:[%s165 + $0x64] sm:$0xf]
      %v254 = vld [vmem:[%s165 + $0x68] sm:$0xf]
      %v255 = vld [vmem:[%s165 + $0x6c] sm:$0xf]
      %v256 = vld [vmem:[%s165 + $0x70] sm:$0xf]
      %v257 = vld [vmem:[%s165 + $0x74] sm:$0xf]
      %v258 = vld [vmem:[%s165 + $0x78] sm:$0xf]
      %v259 = vld [vmem:[%s165 + $0x7c] sm:$0xf]
      %vm260 = vsmask.f32 256
      %vm261 = vsmask.f32 4368
      %vm262 = vmor %vm260, %vm261
      %v264 = vshrl.u32 %v228, 16
      %v266 = vrot.slane %v264, 7
      %v267 = vshll.u32 %v228, 16
      %v269 = vor.u32 %v266, %v267
      %v270 = vrot.slane %v266, 4
      %v272 = vshrl.u32 %v229, 16
      %v274 = vrot.slane %v272, 7
      %v275 = vshll.u32 %v229, 16
      %v277 = vor.u32 %v274, %v275
      %v278 = vsel %vm262, %v270, %v277
      %v279 = vrot.slane %v274, 4
      %v281 = vshrl.u32 %v230, 16
      %v283 = vrot.slane %v281, 7
      %v284 = vshll.u32 %v230, 16
      %v286 = vor.u32 %v283, %v284
      %v287 = vrot.slane %v283, 4
      %v289 = vshrl.u32 %v231, 16
      %v291 = vrot.slane %v289, 7
      %v292 = vshll.u32 %v231, 16
      %v294 = vor.u32 %v291, %v292
      %v295 = vsel %vm262, %v287, %v294
      %v296 = vrot.slane %v291, 4
      %v298 = vshrl.u32 %v232, 16
      %v300 = vrot.slane %v298, 7
      %v301 = vshll.u32 %v232, 16
      %v303 = vor.u32 %v300, %v301
      %v304 = vrot.slane %v300, 4
      %v306 = vshrl.u32 %v233, 16
      %v308 = vrot.slane %v306, 7
      %v309 = vshll.u32 %v233, 16
      %v311 = vor.u32 %v308, %v309
      %v312 = vsel %vm262, %v304, %v311
      %v313 = vrot.slane %v308, 4
      %v315 = vshrl.u32 %v234, 16
      %v317 = vrot.slane %v315, 7
      %v318 = vshll.u32 %v234, 16
      %v320 = vor.u32 %v317, %v318
      %v321 = vrot.slane %v317, 4
      %v323 = vshrl.u32 %v235, 16
      %v325 = vrot.slane %v323, 7
      %v326 = vshll.u32 %v235, 16
      %v328 = vor.u32 %v325, %v326
      %v329 = vsel %vm262, %v321, %v328
      %v330 = vrot.slane %v325, 4
      %v332 = vshrl.u32 %v236, 16
      %v334 = vrot.slane %v332, 7
      %v335 = vshll.u32 %v236, 16
      %v337 = vor.u32 %v334, %v335
      %v338 = vrot.slane %v334, 4
      %v340 = vshrl.u32 %v237, 16
      %v342 = vrot.slane %v340, 7
      %v343 = vshll.u32 %v237, 16
      %v345 = vor.u32 %v342, %v343
      %v346 = vsel %vm262, %v338, %v345
      %v347 = vrot.slane %v342, 4
      %v349 = vshrl.u32 %v238, 16
      %v351 = vrot.slane %v349, 7
      %v352 = vshll.u32 %v238, 16
      %v354 = vor.u32 %v351, %v352
      %v355 = vrot.slane %v351, 4
      %v357 = vshrl.u32 %v239, 16
      %v359 = vrot.slane %v357, 7
      %v360 = vshll.u32 %v239, 16
      %v362 = vor.u32 %v359, %v360
      %v363 = vsel %vm262, %v355, %v362
      %v364 = vrot.slane %v359, 4
      %v366 = vshrl.u32 %v240, 16
      %v368 = vrot.slane %v366, 7
      %v369 = vshll.u32 %v240, 16
      %v371 = vor.u32 %v368, %v369
      %v372 = vrot.slane %v368, 4
      %v374 = vshrl.u32 %v241, 16
      %v376 = vrot.slane %v374, 7
      %v377 = vshll.u32 %v241, 16
      %v379 = vor.u32 %v376, %v377
      %v380 = vsel %vm262, %v372, %v379
      %v381 = vrot.slane %v376, 4
      %v383 = vshrl.u32 %v242, 16
      %v385 = vrot.slane %v383, 7
      %v386 = vshll.u32 %v242, 16
      %v388 = vor.u32 %v385, %v386
      %v389 = vrot.slane %v385, 4
      %v391 = vshrl.u32 %v243, 16
      %v393 = vrot.slane %v391, 7
      %v394 = vshll.u32 %v243, 16
      %v396 = vor.u32 %v393, %v394
      %v397 = vsel %vm262, %v389, %v396
      %v398 = vrot.slane %v393, 4
      %v400 = vshrl.u32 %v244, 16
      %v402 = vrot.slane %v400, 7
      %v403 = vshll.u32 %v244, 16
      %v405 = vor.u32 %v402, %v403
      %v406 = vrot.slane %v402, 4
      %v408 = vshrl.u32 %v245, 16
      %v410 = vrot.slane %v408, 7
      %v411 = vshll.u32 %v245, 16
      %v413 = vor.u32 %v410, %v411
      %v414 = vsel %vm262, %v406, %v413
      %v415 = vrot.slane %v410, 4
      %v417 = vshrl.u32 %v246, 16
      %v419 = vrot.slane %v417, 7
      %v420 = vshll.u32 %v246, 16
      %v422 = vor.u32 %v419, %v420
      %v423 = vrot.slane %v419, 4
      %v425 = vshrl.u32 %v247, 16
      %v427 = vrot.slane %v425, 7
      %v428 = vshll.u32 %v247, 16
      %v430 = vor.u32 %v427, %v428
      %v431 = vsel %vm262, %v423, %v430
      %v432 = vrot.slane %v427, 4
      %v434 = vshrl.u32 %v248, 16
      %v436 = vrot.slane %v434, 7
      %v437 = vshll.u32 %v248, 16
      %v439 = vor.u32 %v436, %v437
      %v440 = vrot.slane %v436, 4
      %v442 = vshrl.u32 %v249, 16
      %v444 = vrot.slane %v442, 7
      %v445 = vshll.u32 %v249, 16
      %v447 = vor.u32 %v444, %v445
      %v448 = vsel %vm262, %v440, %v447
      %v449 = vrot.slane %v444, 4
      %v451 = vshrl.u32 %v250, 16
      %v453 = vrot.slane %v451, 7
      %v454 = vshll.u32 %v250, 16
      %v456 = vor.u32 %v453, %v454
      %v457 = vrot.slane %v453, 4
      %v459 = vshrl.u32 %v251, 16
      %v461 = vrot.slane %v459, 7
      %v462 = vshll.u32 %v251, 16
      %v464 = vor.u32 %v461, %v462
      %v465 = vsel %vm262, %v457, %v464
      %v466 = vrot.slane %v461, 4
      %v468 = vshrl.u32 %v252, 16
      %v470 = vrot.slane %v468, 7
      %v471 = vshll.u32 %v252, 16
      %v473 = vor.u32 %v470, %v471
      %v474 = vrot.slane %v470, 4
      %v476 = vshrl.u32 %v253, 16
      %v478 = vrot.slane %v476, 7
      %v479 = vshll.u32 %v253, 16
      %v481 = vor.u32 %v478, %v479
      %v482 = vsel %vm262, %v474, %v481
      %v483 = vrot.slane %v478, 4
      %v485 = vshrl.u32 %v254, 16
      %v487 = vrot.slane %v485, 7
      %v488 = vshll.u32 %v254, 16
      %v490 = vor.u32 %v487, %v488
      %v491 = vrot.slane %v487, 4
      %v493 = vshrl.u32 %v255, 16
      %v495 = vrot.slane %v493, 7
      %v496 = vshll.u32 %v255, 16
      %v498 = vor.u32 %v495, %v496
      %v499 = vsel %vm262, %v491, %v498
      %v500 = vrot.slane %v495, 4
      %v502 = vshrl.u32 %v256, 16
      %v504 = vrot.slane %v502, 7
      %v505 = vshll.u32 %v256, 16
      %v507 = vor.u32 %v504, %v505
      %v508 = vrot.slane %v504, 4
      %v510 = vshrl.u32 %v257, 16
      %v512 = vrot.slane %v510, 7
      %v513 = vshll.u32 %v257, 16
      %v515 = vor.u32 %v512, %v513
      %v516 = vsel %vm262, %v508, %v515
      %v517 = vrot.slane %v512, 4
      %v519 = vshrl.u32 %v258, 16
      %v521 = vrot.slane %v519, 7
      %v522 = vshll.u32 %v258, 16
      %v524 = vor.u32 %v521, %v522
      %v525 = vrot.slane %v521, 4
      %v527 = vshrl.u32 %v259, 16
      %v529 = vrot.slane %v527, 7
      %v530 = vshll.u32 %v259, 16
      %v532 = vor.u32 %v529, %v530
      %v533 = vsel %vm262, %v525, %v532
      %v534 = vrot.slane %v529, 4
      %s583 = scalar_lea.vmem [#allocation2], 12
      %vm584 = vcmask 27648
      %vm585 = vsmask.f32 7938
      %vm586 = vmand %vm584, %vm585
      %v587 = vld [vmem:[%s583] sm:$0xf]
      %v588 = vsel %vm586, %v269, %v587
      %589 = vst [vmem:[%s583] sm:$0xf] %v588
      %590 = vst.msk [vmem:[%s583 + $0x4] sm:$0xf] %vm172, %v278
      %vm591 = vcmask 24576
      %vm592 = vmand %vm591, %vm260
      %v593 = vld [vmem:[%s583 + $0x8] sm:$0x1]
      %v594 = vsel %vm592, %v279, %v593
      %595 = vst [vmem:[%s583 + $0x8] sm:$0x1] %v594
      %v596 = vld [vmem:[%s583 + $0xc] sm:$0xf]
      %v597 = vsel %vm586, %v286, %v596
      %598 = vst [vmem:[%s583 + $0xc] sm:$0xf] %v597
      %599 = vst.msk [vmem:[%s583 + $0x10] sm:$0xf] %vm172, %v295
      %v600 = vld [vmem:[%s583 + $0x14] sm:$0x1]
      %v601 = vsel %vm592, %v296, %v600
      %602 = vst [vmem:[%s583 + $0x14] sm:$0x1] %v601
      %v603 = vld [vmem:[%s583 + $0x18] sm:$0xf]
      %v604 = vsel %vm586, %v303, %v603
      %605 = vst [vmem:[%s583 + $0x18] sm:$0xf] %v604
      %606 = vst.msk [vmem:[%s583 + $0x1c] sm:$0xf] %vm172, %v312
      %v607 = vld [vmem:[%s583 + $0x20] sm:$0x1]
      %v608 = vsel %vm592, %v313, %v607
      %609 = vst [vmem:[%s583 + $0x20] sm:$0x1] %v608
      %v610 = vld [vmem:[%s583 + $0x24] sm:$0xf]
      %v611 = vsel %vm586, %v320, %v610
      %612 = vst [vmem:[%s583 + $0x24] sm:$0xf] %v611
      %613 = vst.msk [vmem:[%s583 + $0x28] sm:$0xf] %vm172, %v329
      %v614 = vld [vmem:[%s583 + $0x2c] sm:$0x1]
      %v615 = vsel %vm592, %v330, %v614
      %616 = vst [vmem:[%s583 + $0x2c] sm:$0x1] %v615
      %v617 = vld [vmem:[%s583 + $0x30] sm:$0xf]
      %v618 = vsel %vm586, %v337, %v617
      %619 = vst [vmem:[%s583 + $0x30] sm:$0xf] %v618
      %620 = vst.msk [vmem:[%s583 + $0x34] sm:$0xf] %vm172, %v346
      %v621 = vld [vmem:[%s583 + $0x38] sm:$0x1]
      %v622 = vsel %vm592, %v347, %v621
      %623 = vst [vmem:[%s583 + $0x38] sm:$0x1] %v622
      %v624 = vld [vmem:[%s583 + $0x3c] sm:$0xf]
      %v625 = vsel %vm586, %v354, %v624
      %626 = vst [vmem:[%s583 + $0x3c] sm:$0xf] %v625
      %627 = vst.msk [vmem:[%s583 + $0x40] sm:$0xf] %vm172, %v363
      %v628 = vld [vmem:[%s583 + $0x44] sm:$0x1]
      %v629 = vsel %vm592, %v364, %v628
      %630 = vst [vmem:[%s583 + $0x44] sm:$0x1] %v629
      %v631 = vld [vmem:[%s583 + $0x48] sm:$0xf]
      %v632 = vsel %vm586, %v371, %v631
      %633 = vst [vmem:[%s583 + $0x48] sm:$0xf] %v632
      %634 = vst.msk [vmem:[%s583 + $0x4c] sm:$0xf] %vm172, %v380
      %v635 = vld [vmem:[%s583 + $0x50] sm:$0x1]
      %v636 = vsel %vm592, %v381, %v635
      %637 = vst [vmem:[%s583 + $0x50] sm:$0x1] %v636
      %v638 = vld [vmem:[%s583 + $0x54] sm:$0xf]
      %v639 = vsel %vm586, %v388, %v638
      %640 = vst [vmem:[%s583 + $0x54] sm:$0xf] %v639
      %641 = vst.msk [vmem:[%s583 + $0x58] sm:$0xf] %vm172, %v397
      %v642 = vld [vmem:[%s583 + $0x5c] sm:$0x1]
      %v643 = vsel %vm592, %v398, %v642
      %644 = vst [vmem:[%s583 + $0x5c] sm:$0x1] %v643
      %v645 = vld [vmem:[%s583 + $0x60] sm:$0xf]
      %v646 = vsel %vm586, %v405, %v645
      %647 = vst [vmem:[%s583 + $0x60] sm:$0xf] %v646
      %648 = vst.msk [vmem:[%s583 + $0x64] sm:$0xf] %vm172, %v414
      %v649 = vld [vmem:[%s583 + $0x68] sm:$0x1]
      %v650 = vsel %vm592, %v415, %v649
      %651 = vst [vmem:[%s583 + $0x68] sm:$0x1] %v650
      %v652 = vld [vmem:[%s583 + $0x6c] sm:$0xf]
      %v653 = vsel %vm586, %v422, %v652
      %654 = vst [vmem:[%s583 + $0x6c] sm:$0xf] %v653
      %655 = vst.msk [vmem:[%s583 + $0x70] sm:$0xf] %vm172, %v431
      %v656 = vld [vmem:[%s583 + $0x74] sm:$0x1]
      %v657 = vsel %vm592, %v432, %v656
      %658 = vst [vmem:[%s583 + $0x74] sm:$0x1] %v657
      %v659 = vld [vmem:[%s583 + $0x78] sm:$0xf]
      %v660 = vsel %vm586, %v439, %v659
      %661 = vst [vmem:[%s583 + $0x78] sm:$0xf] %v660
      %662 = vst.msk [vmem:[%s583 + $0x7c] sm:$0xf] %vm172, %v448
      %v663 = vld [vmem:[%s583 + $0x80] sm:$0x1]
      %v664 = vsel %vm592, %v449, %v663
      %665 = vst [vmem:[%s583 + $0x80] sm:$0x1] %v664
      %v666 = vld [vmem:[%s583 + $0x84] sm:$0xf]
      %v667 = vsel %vm586, %v456, %v666
      %668 = vst [vmem:[%s583 + $0x84] sm:$0xf] %v667
      %669 = vst.msk [vmem:[%s583 + $0x88] sm:$0xf] %vm172, %v465
      %v670 = vld [vmem:[%s583 + $0x8c] sm:$0x1]
      %v671 = vsel %vm592, %v466, %v670
      %672 = vst [vmem:[%s583 + $0x8c] sm:$0x1] %v671
      %v673 = vld [vmem:[%s583 + $0x90] sm:$0xf]
      %v674 = vsel %vm586, %v473, %v673
      %675 = vst [vmem:[%s583 + $0x90] sm:$0xf] %v674
      %676 = vst.msk [vmem:[%s583 + $0x94] sm:$0xf] %vm172, %v482
      %v677 = vld [vmem:[%s583 + $0x98] sm:$0x1]
      %v678 = vsel %vm592, %v483, %v677
      %679 = vst [vmem:[%s583 + $0x98] sm:$0x1] %v678
      %v680 = vld [vmem:[%s583 + $0x9c] sm:$0xf]
      %v681 = vsel %vm586, %v490, %v680
      %682 = vst [vmem:[%s583 + $0x9c] sm:$0xf] %v681
      %683 = vst.msk [vmem:[%s583 + $0xa0] sm:$0xf] %vm172, %v499
      %v684 = vld [vmem:[%s583 + $0xa4] sm:$0x1]
      %v685 = vsel %vm592, %v500, %v684
      %686 = vst [vmem:[%s583 + $0xa4] sm:$0x1] %v685
      %v687 = vld [vmem:[%s583 + $0xa8] sm:$0xf]
      %v688 = vsel %vm586, %v507, %v687
      %689 = vst [vmem:[%s583 + $0xa8] sm:$0xf] %v688
      %690 = vst.msk [vmem:[%s583 + $0xac] sm:$0xf] %vm172, %v516
      %v691 = vld [vmem:[%s583 + $0xb0] sm:$0x1]
      %v692 = vsel %vm592, %v517, %v691
      %693 = vst [vmem:[%s583 + $0xb0] sm:$0x1] %v692
      %v694 = vld [vmem:[%s583 + $0xb4] sm:$0xf]
      %v695 = vsel %vm586, %v524, %v694
      %696 = vst [vmem:[%s583 + $0xb4] sm:$0xf] %v695
      %697 = vst.msk [vmem:[%s583 + $0xb8] sm:$0xf] %vm172, %v533
      %v698 = vld [vmem:[%s583 + $0xbc] sm:$0x1]
      %v699 = vsel %vm592, %v534, %v698
      %700 = vst [vmem:[%s583 + $0xbc] sm:$0x1] %v699
      %v701 = vld [vmem:[#allocation2] sm:$0xf]
      %v702 = vld [vmem:[#allocation2 + $0x4] sm:$0xf]
      %v703 = vld [vmem:[#allocation2 + $0x8] sm:$0x1]
      %v704 = vld [vmem:[#allocation2 + $0xc] sm:$0xf]
      %v705 = vld [vmem:[#allocation2 + $0x10] sm:$0xf]
      %v706 = vld [vmem:[#allocation2 + $0x14] sm:$0x1]
      %v707 = vld [vmem:[#allocation2 + $0x18] sm:$0xf]
      %v708 = vld [vmem:[#allocation2 + $0x1c] sm:$0xf]
      %v709 = vld [vmem:[#allocation2 + $0x20] sm:$0x1]
      %v710 = vld [vmem:[#allocation2 + $0x24] sm:$0xf]
      %v711 = vld [vmem:[#allocation2 + $0x28] sm:$0xf]
      %v712 = vld [vmem:[#allocation2 + $0x2c] sm:$0x1]
      %v713 = vld [vmem:[#allocation2 + $0x30] sm:$0xf]
      %v714 = vld [vmem:[#allocation2 + $0x34] sm:$0xf]
      %v715 = vld [vmem:[#allocation2 + $0x38] sm:$0x1]
      %v716 = vld [vmem:[#allocation2 + $0x3c] sm:$0xf]
      %v717 = vld [vmem:[#allocation2 + $0x40] sm:$0xf]
      %v718 = vld [vmem:[#allocation2 + $0x44] sm:$0x1]
      %v719 = vld [vmem:[#allocation2 + $0x48] sm:$0xf]
      %v720 = vld [vmem:[#allocation2 + $0x4c] sm:$0xf]
      %v721 = vld [vmem:[#allocation2 + $0x50] sm:$0x1]
      %v722 = vld [vmem:[#allocation2 + $0x54] sm:$0xf]
      %v723 = vld [vmem:[#allocation2 + $0x58] sm:$0xf]
      %v724 = vld [vmem:[#allocation2 + $0x5c] sm:$0x1]
      %v725 = vld [vmem:[#allocation2 + $0x60] sm:$0xf]
      %v726 = vld [vmem:[#allocation2 + $0x64] sm:$0xf]
      %v727 = vld [vmem:[#allocation2 + $0x68] sm:$0x1]
      %v728 = vld [vmem:[#allocation2 + $0x6c] sm:$0xf]
      %v729 = vld [vmem:[#allocation2 + $0x70] sm:$0xf]
      %v730 = vld [vmem:[#allocation2 + $0x74] sm:$0x1]
      %v731 = vld [vmem:[#allocation2 + $0x78] sm:$0xf]
      %v732 = vld [vmem:[#allocation2 + $0x7c] sm:$0xf]
      %v733 = vld [vmem:[#allocation2 + $0x80] sm:$0x1]
      %v734 = vld [vmem:[#allocation2 + $0x84] sm:$0xf]
      %v735 = vld [vmem:[#allocation2 + $0x88] sm:$0xf]
      %v736 = vld [vmem:[#allocation2 + $0x8c] sm:$0x1]
      %v737 = vld [vmem:[#allocation2 + $0x90] sm:$0xf]
      %v738 = vld [vmem:[#allocation2 + $0x94] sm:$0xf]
      %v739 = vld [vmem:[#allocation2 + $0x98] sm:$0x1]
      %v740 = vld [vmem:[#allocation2 + $0x9c] sm:$0xf]
      %v741 = vld [vmem:[#allocation2 + $0xa0] sm:$0xf]
      %v742 = vld [vmem:[#allocation2 + $0xa4] sm:$0x1]
      %v743 = vld [vmem:[#allocation2 + $0xa8] sm:$0xf]
      %v744 = vld [vmem:[#allocation2 + $0xac] sm:$0xf]
      %v745 = vld [vmem:[#allocation2 + $0xb0] sm:$0x1]
      %v746 = vld [vmem:[#allocation2 + $0xb4] sm:$0xf]
      %v747 = vld [vmem:[#allocation2 + $0xb8] sm:$0xf]
      %v748 = vld [vmem:[#allocation2 + $0xbc] sm:$0x1]
      %v749 = vld [vmem:[#allocation2 + $0xc0] sm:$0xf]
      %v750 = vld [vmem:[#allocation2 + $0xc4] sm:$0xf]
      %v751 = vld [vmem:[#allocation2 + $0xc8] sm:$0x1]
      %v752 = vld [vmem:[#allocation2 + $0xcc] sm:$0xf]
      %v753 = vld [vmem:[#allocation2 + $0xd0] sm:$0xf]
      %v754 = vld [vmem:[#allocation2 + $0xd4] sm:$0x1]
      %v787 = vunpack.c.l.b16 %v701
      %v788 = vunpack.c.l.b16 %v702
      %v789 = vunpack.c.l.b16 %v704
      %v790 = vunpack.c.l.b16 %v705
      %v791 = vunpack.c.l.b16 %v707
      %v792 = vunpack.c.l.b16 %v708
      %v793 = vunpack.c.l.b16 %v710
      %v794 = vunpack.c.l.b16 %v711
      %v795 = vunpack.c.l.b16 %v713
      %v796 = vunpack.c.l.b16 %v714
      %v797 = vunpack.c.l.b16 %v716
      %v798 = vunpack.c.l.b16 %v717
      %v799 = vunpack.c.l.b16 %v719
      %v800 = vunpack.c.l.b16 %v720
      %v801 = vunpack.c.l.b16 %v722
      %v802 = vunpack.c.l.b16 %v723
      %v803 = vunpack.c.l.b16 %v725
      %v804 = vunpack.c.l.b16 %v726
      %v805 = vunpack.c.l.b16 %v728
      %v806 = vunpack.c.l.b16 %v729
      %v807 = vunpack.c.l.b16 %v731
      %v808 = vunpack.c.l.b16 %v732
      %v809 = vunpack.c.l.b16 %v734
      %v810 = vunpack.c.l.b16 %v735
      %v811 = vunpack.c.l.b16 %v737
      %v812 = vunpack.c.l.b16 %v738
      %v813 = vunpack.c.l.b16 %v740
      %v814 = vunpack.c.l.b16 %v741
      %v815 = vunpack.c.l.b16 %v743
      %v816 = vunpack.c.l.b16 %v744
      %v817 = vunpack.c.l.b16 %v746
      %v818 = vunpack.c.l.b16 %v747
      %v819 = vpack.c.b16 %v788, %v787
      %v820 = vpack.c.b16 %v790, %v789
      %v821 = vpack.c.b16 %v792, %v791
      %v822 = vpack.c.b16 %v794, %v793
      %v823 = vpack.c.b16 %v796, %v795
      %v824 = vpack.c.b16 %v798, %v797
      %v825 = vpack.c.b16 %v800, %v799
      %v826 = vpack.c.b16 %v802, %v801
      %v827 = vpack.c.b16 %v804, %v803
      %v828 = vpack.c.b16 %v806, %v805
      %v829 = vpack.c.b16 %v808, %v807
      %v830 = vpack.c.b16 %v810, %v809
      %v831 = vpack.c.b16 %v812, %v811
      %v832 = vpack.c.b16 %v814, %v813
      %v833 = vpack.c.b16 %v816, %v815
      %v834 = vpack.c.b16 %v818, %v817
      %v851 = vunpack.c.l.b16 %v703
      %v852 = vunpack.c.l.b16 %v706
      %v853 = vunpack.c.l.b16 %v709
      %v854 = vunpack.c.l.b16 %v712
      %v855 = vunpack.c.l.b16 %v715
      %v856 = vunpack.c.l.b16 %v718
      %v857 = vunpack.c.l.b16 %v721
      %v858 = vunpack.c.l.b16 %v724
      %v859 = vunpack.c.l.b16 %v727
      %v860 = vunpack.c.l.b16 %v730
      %v861 = vunpack.c.l.b16 %v733
      %v862 = vunpack.c.l.b16 %v736
      %v863 = vunpack.c.l.b16 %v739
      %v864 = vunpack.c.l.b16 %v742
      %v865 = vunpack.c.l.b16 %v745
      %v866 = vunpack.c.l.b16 %v748
      %v867 = vpack.c.b16 %v851, %v851
      %v868 = vpack.c.b16 %v852, %v852
      %v869 = vpack.c.b16 %v853, %v853
      %v870 = vpack.c.b16 %v854, %v854
      %v871 = vpack.c.b16 %v855, %v855
      %v872 = vpack.c.b16 %v856, %v856
      %v873 = vpack.c.b16 %v857, %v857
      %v874 = vpack.c.b16 %v858, %v858
      %v875 = vpack.c.b16 %v859, %v859
      %v876 = vpack.c.b16 %v860, %v860
      %v877 = vpack.c.b16 %v861, %v861
      %v878 = vpack.c.b16 %v862, %v862
      %v879 = vpack.c.b16 %v863, %v863
      %v880 = vpack.c.b16 %v864, %v864
      %v881 = vpack.c.b16 %v865, %v865
      %v882 = vpack.c.b16 %v866, %v866
      %vm883 = vsmask.f32 7424
      %v885 = vshrl.u32 %v819, 16
      %v887 = vshll.u32 %v819, 16
      %v889 = vrot.slane %v887, 1
      %v890 = vor.u32 %v885, %v889
      %v892 = vshll.u32 %v867, 16
      %v894 = vrot.slane %v892, 1
      %v895 = vsel %vm883, %v890, %v894
      %v897 = vshrl.u32 %v820, 16
      %v899 = vshll.u32 %v820, 16
      %v901 = vrot.slane %v899, 1
      %v902 = vor.u32 %v897, %v901
      %v904 = vshll.u32 %v868, 16
      %v906 = vrot.slane %v904, 1
      %v907 = vsel %vm883, %v902, %v906
      %v909 = vshrl.u32 %v821, 16
      %v911 = vshll.u32 %v821, 16
      %v913 = vrot.slane %v911, 1
      %v914 = vor.u32 %v909, %v913
      %v916 = vshll.u32 %v869, 16
      %v918 = vrot.slane %v916, 1
      %v919 = vsel %vm883, %v914, %v918
      %v921 = vshrl.u32 %v822, 16
      %v923 = vshll.u32 %v822, 16
      %v925 = vrot.slane %v923, 1
      %v926 = vor.u32 %v921, %v925
      %v928 = vshll.u32 %v870, 16
      %v930 = vrot.slane %v928, 1
      %v931 = vsel %vm883, %v926, %v930
      %v933 = vshrl.u32 %v823, 16
      %v935 = vshll.u32 %v823, 16
      %v937 = vrot.slane %v935, 1
      %v938 = vor.u32 %v933, %v937
      %v940 = vshll.u32 %v871, 16
      %v942 = vrot.slane %v940, 1
      %v943 = vsel %vm883, %v938, %v942
      %v945 = vshrl.u32 %v824, 16
      %v947 = vshll.u32 %v824, 16
      %v949 = vrot.slane %v947, 1
      %v950 = vor.u32 %v945, %v949
      %v952 = vshll.u32 %v872, 16
      %v954 = vrot.slane %v952, 1
      %v955 = vsel %vm883, %v950, %v954
      %v957 = vshrl.u32 %v825, 16
      %v959 = vshll.u32 %v825, 16
      %v961 = vrot.slane %v959, 1
      %v962 = vor.u32 %v957, %v961
      %v964 = vshll.u32 %v873, 16
      %v966 = vrot.slane %v964, 1
      %v967 = vsel %vm883, %v962, %v966
      %v969 = vshrl.u32 %v826, 16
      %v971 = vshll.u32 %v826, 16
      %v973 = vrot.slane %v971, 1
      %v974 = vor.u32 %v969, %v973
      %v976 = vshll.u32 %v874, 16
      %v978 = vrot.slane %v976, 1
      %v979 = vsel %vm883, %v974, %v978
      %v981 = vshrl.u32 %v827, 16
      %v983 = vshll.u32 %v827, 16
      %v985 = vrot.slane %v983, 1
      %v986 = vor.u32 %v981, %v985
      %v988 = vshll.u32 %v875, 16
      %v990 = vrot.slane %v988, 1
      %v991 = vsel %vm883, %v986, %v990
      %v993 = vshrl.u32 %v828, 16
      %v995 = vshll.u32 %v828, 16
      %v997 = vrot.slane %v995, 1
      %v998 = vor.u32 %v993, %v997
      %v1000 = vshll.u32 %v876, 16
      %v1002 = vrot.slane %v1000, 1
      %v1003 = vsel %vm883, %v998, %v1002
      %v1005 = vshrl.u32 %v829, 16
      %v1007 = vshll.u32 %v829, 16
      %v1009 = vrot.slane %v1007, 1
      %v1010 = vor.u32 %v1005, %v1009
      %v1012 = vshll.u32 %v877, 16
      %v1014 = vrot.slane %v1012, 1
      %v1015 = vsel %vm883, %v1010, %v1014
      %v1017 = vshrl.u32 %v830, 16
      %v1019 = vshll.u32 %v830, 16
      %v1021 = vrot.slane %v1019, 1
      %v1022 = vor.u32 %v1017, %v1021
      %v1024 = vshll.u32 %v878, 16
      %v1026 = vrot.slane %v1024, 1
      %v1027 = vsel %vm883, %v1022, %v1026
      %v1029 = vshrl.u32 %v831, 16
      %v1031 = vshll.u32 %v831, 16
      %v1033 = vrot.slane %v1031, 1
      %v1034 = vor.u32 %v1029, %v1033
      %v1036 = vshll.u32 %v879, 16
      %v1038 = vrot.slane %v1036, 1
      %v1039 = vsel %vm883, %v1034, %v1038
      %v1041 = vshrl.u32 %v832, 16
      %v1043 = vshll.u32 %v832, 16
      %v1045 = vrot.slane %v1043, 1
      %v1046 = vor.u32 %v1041, %v1045
      %v1048 = vshll.u32 %v880, 16
      %v1050 = vrot.slane %v1048, 1
      %v1051 = vsel %vm883, %v1046, %v1050
      %v1053 = vshrl.u32 %v833, 16
      %v1055 = vshll.u32 %v833, 16
      %v1057 = vrot.slane %v1055, 1
      %v1058 = vor.u32 %v1053, %v1057
      %v1060 = vshll.u32 %v881, 16
      %v1062 = vrot.slane %v1060, 1
      %v1063 = vsel %vm883, %v1058, %v1062
      %v1065 = vshrl.u32 %v834, 16
      %v1067 = vshll.u32 %v834, 16
      %v1069 = vrot.slane %v1067, 1
      %v1070 = vor.u32 %v1065, %v1069
      %v1072 = vshll.u32 %v882, 16
      %v1074 = vrot.slane %v1072, 1
      %v1075 = vsel %vm883, %v1070, %v1074
      %1076 = vrot.lane.b32.xlu0 %v895, 4
      %v1077 = vpop.permute.xlu0 %1076
      %1078 = vrot.lane.b32.xlu0 %v907, 4
      %v1079 = vpop.permute.xlu0 %1078
      %1080 = vrot.lane.b32.xlu0 %v919, 4
      %v1081 = vpop.permute.xlu0 %1080
      %1082 = vrot.lane.b32.xlu0 %v931, 4
      %v1083 = vpop.permute.xlu0 %1082
      %1084 = vrot.lane.b32.xlu0 %v943, 4
      %v1085 = vpop.permute.xlu0 %1084
      %1086 = vrot.lane.b32.xlu0 %v955, 4
      %v1087 = vpop.permute.xlu0 %1086
      %1088 = vrot.lane.b32.xlu0 %v967, 4
      %v1089 = vpop.permute.xlu0 %1088
      %1090 = vrot.lane.b32.xlu0 %v979, 4
      %v1091 = vpop.permute.xlu0 %1090
      %1092 = vrot.lane.b32.xlu0 %v991, 4
      %v1093 = vpop.permute.xlu0 %1092
      %1094 = vrot.lane.b32.xlu0 %v1003, 4
      %v1095 = vpop.permute.xlu0 %1094
      %1096 = vrot.lane.b32.xlu0 %v1015, 4
      %v1097 = vpop.permute.xlu0 %1096
      %1098 = vrot.lane.b32.xlu0 %v1027, 4
      %v1099 = vpop.permute.xlu0 %1098
      %1100 = vrot.lane.b32.xlu0 %v1039, 4
      %v1101 = vpop.permute.xlu0 %1100
      %1102 = vrot.lane.b32.xlu0 %v1051, 4
      %v1103 = vpop.permute.xlu0 %1102
      %1104 = vrot.lane.b32.xlu0 %v1063, 4
      %v1105 = vpop.permute.xlu0 %1104
      %1106 = vrot.lane.b32.xlu0 %v1075, 4
      %v1107 = vpop.permute.xlu0 %1106
      %vm1108 = vcmask 1046528
      %v1109 = vrot.slane %v819, 1
      %v1110 = vrot.slane %v867, 1
      %v1111 = vsel %vm1108, %v1109, %v1110
      %v1112 = vrot.slane %v820, 1
      %v1113 = vrot.slane %v868, 1
      %v1114 = vsel %vm1108, %v1112, %v1113
      %v1115 = vrot.slane %v821, 1
      %v1116 = vrot.slane %v869, 1
      %v1117 = vsel %vm1108, %v1115, %v1116
      %v1118 = vrot.slane %v822, 1
      %v1119 = vrot.slane %v870, 1
      %v1120 = vsel %vm1108, %v1118, %v1119
      %v1121 = vrot.slane %v823, 1
      %v1122 = vrot.slane %v871, 1
      %v1123 = vsel %vm1108, %v1121, %v1122
      %v1124 = vrot.slane %v824, 1
      %v1125 = vrot.slane %v872, 1
      %v1126 = vsel %vm1108, %v1124, %v1125
      %v1127 = vrot.slane %v825, 1
      %v1128 = vrot.slane %v873, 1
      %v1129 = vsel %vm1108, %v1127, %v1128
      %v1130 = vrot.slane %v826, 1
      %v1131 = vrot.slane %v874, 1
      %v1132 = vsel %vm1108, %v1130, %v1131
      %v1133 = vrot.slane %v827, 1
      %v1134 = vrot.slane %v875, 1
      %v1135 = vsel %vm1108, %v1133, %v1134
      %v1136 = vrot.slane %v828, 1
      %v1137 = vrot.slane %v876, 1
      %v1138 = vsel %vm1108, %v1136, %v1137
      %v1139 = vrot.slane %v829, 1
      %v1140 = vrot.slane %v877, 1
      %v1141 = vsel %vm1108, %v1139, %v1140
      %v1142 = vrot.slane %v830, 1
      %v1143 = vrot.slane %v878, 1
      %v1144 = vsel %vm1108, %v1142, %v1143
      %v1145 = vrot.slane %v831, 1
      %v1146 = vrot.slane %v879, 1
      %v1147 = vsel %vm1108, %v1145, %v1146
      %v1148 = vrot.slane %v832, 1
      %v1149 = vrot.slane %v880, 1
      %v1150 = vsel %vm1108, %v1148, %v1149
      %v1151 = vrot.slane %v833, 1
      %v1152 = vrot.slane %v881, 1
      %v1153 = vsel %vm1108, %v1151, %v1152
      %v1154 = vrot.slane %v834, 1
      %v1155 = vrot.slane %v882, 1
      %v1156 = vsel %vm1108, %v1154, %v1155
      %1157 = vrot.lane.b32.xlu0 %v1111, 8
      %v1158 = vpop.permute.xlu0 %1157
      %1159 = vrot.lane.b32.xlu0 %v1114, 8
      %v1160 = vpop.permute.xlu0 %1159
      %1161 = vrot.lane.b32.xlu0 %v1117, 8
      %v1162 = vpop.permute.xlu0 %1161
      %1163 = vrot.lane.b32.xlu0 %v1120, 8
      %v1164 = vpop.permute.xlu0 %1163
      %1165 = vrot.lane.b32.xlu0 %v1123, 8
      %v1166 = vpop.permute.xlu0 %1165
      %1167 = vrot.lane.b32.xlu0 %v1126, 8
      %v1168 = vpop.permute.xlu0 %1167
      %1169 = vrot.lane.b32.xlu0 %v1129, 8
      %v1170 = vpop.permute.xlu0 %1169
      %1171 = vrot.lane.b32.xlu0 %v1132, 8
      %v1172 = vpop.permute.xlu0 %1171
      %1173 = vrot.lane.b32.xlu0 %v1135, 8
      %v1174 = vpop.permute.xlu0 %1173
      %1175 = vrot.lane.b32.xlu0 %v1138, 8
      %v1176 = vpop.permute.xlu0 %1175
      %1177 = vrot.lane.b32.xlu0 %v1141, 8
      %v1178 = vpop.permute.xlu0 %1177
      %1179 = vrot.lane.b32.xlu0 %v1144, 8
      %v1180 = vpop.permute.xlu0 %1179
      %1181 = vrot.lane.b32.xlu0 %v1147, 8
      %v1182 = vpop.permute.xlu0 %1181
      %1183 = vrot.lane.b32.xlu0 %v1150, 8
      %v1184 = vpop.permute.xlu0 %1183
      %1185 = vrot.lane.b32.xlu0 %v1153, 8
      %v1186 = vpop.permute.xlu0 %1185
      %1187 = vrot.lane.b32.xlu0 %v1156, 8
      %v1188 = vpop.permute.xlu0 %1187
      %v1191 = vunpack.c.l.b16 %v749
      %v1192 = vunpack.c.l.b16 %v750
      %v1193 = vpack.c.b16 %v1192, %v1191
      %1194 = vrot.lane.b32.xlu0 %v820, 12
      %v1195 = vpop.permute.xlu0 %1194
      %1196 = vrot.lane.b32.xlu0 %v821, 12
      %v1197 = vpop.permute.xlu0 %1196
      %1198 = vrot.lane.b32.xlu0 %v822, 12
      %v1199 = vpop.permute.xlu0 %1198
      %1200 = vrot.lane.b32.xlu0 %v823, 12
      %v1201 = vpop.permute.xlu0 %1200
      %1202 = vrot.lane.b32.xlu0 %v824, 12
      %v1203 = vpop.permute.xlu0 %1202
      %1204 = vrot.lane.b32.xlu0 %v825, 12
      %v1205 = vpop.permute.xlu0 %1204
      %1206 = vrot.lane.b32.xlu0 %v826, 12
      %v1207 = vpop.permute.xlu0 %1206
      %1208 = vrot.lane.b32.xlu0 %v827, 12
      %v1209 = vpop.permute.xlu0 %1208
      %1210 = vrot.lane.b32.xlu0 %v828, 12
      %v1211 = vpop.permute.xlu0 %1210
      %1212 = vrot.lane.b32.xlu0 %v829, 12
      %v1213 = vpop.permute.xlu0 %1212
      %1214 = vrot.lane.b32.xlu0 %v830, 12
      %v1215 = vpop.permute.xlu0 %1214
      %1216 = vrot.lane.b32.xlu0 %v831, 12
      %v1217 = vpop.permute.xlu0 %1216
      %1218 = vrot.lane.b32.xlu0 %v832, 12
      %v1219 = vpop.permute.xlu0 %1218
      %1220 = vrot.lane.b32.xlu0 %v833, 12
      %v1221 = vpop.permute.xlu0 %1220
      %1222 = vrot.lane.b32.xlu0 %v834, 12
      %v1223 = vpop.permute.xlu0 %1222
      %1224 = vrot.lane.b32.xlu0 %v1193, 12
      %v1225 = vpop.permute.xlu0 %1224
      %v1227 = vunpack.c.l.b16 %v751
      %v1228 = vpack.c.b16 %v1227, %v1227
      %v1230 = vshrl.u32 %v1193, 16
      %v1232 = vshll.u32 %v1193, 16
      %v1234 = vrot.slane %v1232, 1
      %v1235 = vor.u32 %v1230, %v1234
      %v1237 = vshll.u32 %v1228, 16
      %v1239 = vrot.slane %v1237, 1
      %v1240 = vsel %vm883, %v1235, %v1239
      %1241 = vrot.lane.b32.xlu0 %v907, 16
      %v1242 = vpop.permute.xlu0 %1241
      %1243 = vrot.lane.b32.xlu0 %v919, 16
      %v1244 = vpop.permute.xlu0 %1243
      %1245 = vrot.lane.b32.xlu0 %v931, 16
      %v1246 = vpop.permute.xlu0 %1245
      %1247 = vrot.lane.b32.xlu0 %v943, 16
      %v1248 = vpop.permute.xlu0 %1247
      %1249 = vrot.lane.b32.xlu0 %v955, 16
      %v1250 = vpop.permute.xlu0 %1249
      %1251 = vrot.lane.b32.xlu0 %v967, 16
      %v1252 = vpop.permute.xlu0 %1251
      %1253 = vrot.lane.b32.xlu0 %v979, 16
      %v1254 = vpop.permute.xlu0 %1253
      %1255 = vrot.lane.b32.xlu0 %v991, 16
      %v1256 = vpop.permute.xlu0 %1255
      %1257 = vrot.lane.b32.xlu0 %v1003, 16
      %v1258 = vpop.permute.xlu0 %1257
      %1259 = vrot.lane.b32.xlu0 %v1015, 16
      %v1260 = vpop.permute.xlu0 %1259
      %1261 = vrot.lane.b32.xlu0 %v1027, 16
      %v1262 = vpop.permute.xlu0 %1261
      %1263 = vrot.lane.b32.xlu0 %v1039, 16
      %v1264 = vpop.permute.xlu0 %1263
      %1265 = vrot.lane.b32.xlu0 %v1051, 16
      %v1266 = vpop.permute.xlu0 %1265
      %1267 = vrot.lane.b32.xlu0 %v1063, 16
      %v1268 = vpop.permute.xlu0 %1267
      %1269 = vrot.lane.b32.xlu0 %v1075, 16
      %v1270 = vpop.permute.xlu0 %1269
      %1271 = vrot.lane.b32.xlu0 %v1240, 16
      %v1272 = vpop.permute.xlu0 %1271
      %v1273 = vrot.slane %v1193, 1
      %v1274 = vrot.slane %v1228, 1
      %v1275 = vsel %vm1108, %v1273, %v1274
      %1276 = vrot.lane.b32.xlu0 %v1114, 20
      %v1277 = vpop.permute.xlu0 %1276
      %1278 = vrot.lane.b32.xlu0 %v1117, 20
      %v1279 = vpop.permute.xlu0 %1278
      %1280 = vrot.lane.b32.xlu0 %v1120, 20
      %v1281 = vpop.permute.xlu0 %1280
      %1282 = vrot.lane.b32.xlu0 %v1123, 20
      %v1283 = vpop.permute.xlu0 %1282
      %1284 = vrot.lane.b32.xlu0 %v1126, 20
      %v1285 = vpop.permute.xlu0 %1284
      %1286 = vrot.lane.b32.xlu0 %v1129, 20
      %v1287 = vpop.permute.xlu0 %1286
      %1288 = vrot.lane.b32.xlu0 %v1132, 20
      %v1289 = vpop.permute.xlu0 %1288
      %1290 = vrot.lane.b32.xlu0 %v1135, 20
      %v1291 = vpop.permute.xlu0 %1290
      %1292 = vrot.lane.b32.xlu0 %v1138, 20
      %v1293 = vpop.permute.xlu0 %1292
      %1294 = vrot.lane.b32.xlu0 %v1141, 20
      %v1295 = vpop.permute.xlu0 %1294
      %1296 = vrot.lane.b32.xlu0 %v1144, 20
      %v1297 = vpop.permute.xlu0 %1296
      %1298 = vrot.lane.b32.xlu0 %v1147, 20
      %v1299 = vpop.permute.xlu0 %1298
      %1300 = vrot.lane.b32.xlu0 %v1150, 20
      %v1301 = vpop.permute.xlu0 %1300
      %1302 = vrot.lane.b32.xlu0 %v1153, 20
      %v1303 = vpop.permute.xlu0 %1302
      %1304 = vrot.lane.b32.xlu0 %v1156, 20
      %v1305 = vpop.permute.xlu0 %1304
      %1306 = vrot.lane.b32.xlu0 %v1275, 20
      %v1307 = vpop.permute.xlu0 %1306
      %v1310 = vunpack.c.l.b16 %v752
      %v1311 = vunpack.c.l.b16 %v753
      %v1312 = vpack.c.b16 %v1311, %v1310
      %1313 = vrot.lane.b32.xlu0 %v821, 24
      %v1314 = vpop.permute.xlu0 %1313
      %1315 = vrot.lane.b32.xlu0 %v822, 24
      %v1316 = vpop.permute.xlu0 %1315
      %1317 = vrot.lane.b32.xlu0 %v823, 24
      %v1318 = vpop.permute.xlu0 %1317
      %1319 = vrot.lane.b32.xlu0 %v824, 24
      %v1320 = vpop.permute.xlu0 %1319
      %1321 = vrot.lane.b32.xlu0 %v825, 24
      %v1322 = vpop.permute.xlu0 %1321
      %1323 = vrot.lane.b32.xlu0 %v826, 24
      %v1324 = vpop.permute.xlu0 %1323
      %1325 = vrot.lane.b32.xlu0 %v827, 24
      %v1326 = vpop.permute.xlu0 %1325
      %1327 = vrot.lane.b32.xlu0 %v828, 24
      %v1328 = vpop.permute.xlu0 %1327
      %1329 = vrot.lane.b32.xlu0 %v829, 24
      %v1330 = vpop.permute.xlu0 %1329
      %1331 = vrot.lane.b32.xlu0 %v830, 24
      %v1332 = vpop.permute.xlu0 %1331
      %1333 = vrot.lane.b32.xlu0 %v831, 24
      %v1334 = vpop.permute.xlu0 %1333
      %1335 = vrot.lane.b32.xlu0 %v832, 24
      %v1336 = vpop.permute.xlu0 %1335
      %1337 = vrot.lane.b32.xlu0 %v833, 24
      %v1338 = vpop.permute.xlu0 %1337
      %1339 = vrot.lane.b32.xlu0 %v834, 24
      %v1340 = vpop.permute.xlu0 %1339
      %1341 = vrot.lane.b32.xlu0 %v1193, 24
      %v1342 = vpop.permute.xlu0 %1341
      %1343 = vrot.lane.b32.xlu0 %v1312, 24
      %v1344 = vpop.permute.xlu0 %1343
      %v1346 = vunpack.c.l.b16 %v754
      %v1347 = vpack.c.b16 %v1346, %v1346
      %v1349 = vshrl.u32 %v1312, 16
      %v1351 = vshll.u32 %v1312, 16
      %v1353 = vrot.slane %v1351, 1
      %v1354 = vor.u32 %v1349, %v1353
      %v1356 = vshll.u32 %v1347, 16
      %v1358 = vrot.slane %v1356, 1
      %v1359 = vsel %vm883, %v1354, %v1358
      %1360 = vrot.lane.b32.xlu0 %v919, 28
      %v1361 = vpop.permute.xlu0 %1360
      %1362 = vrot.lane.b32.xlu0 %v931, 28
      %v1363 = vpop.permute.xlu0 %1362
      %1364 = vrot.lane.b32.xlu0 %v943, 28
      %v1365 = vpop.permute.xlu0 %1364
      %1366 = vrot.lane.b32.xlu0 %v955, 28
      %v1367 = vpop.permute.xlu0 %1366
      %1368 = vrot.lane.b32.xlu0 %v967, 28
      %v1369 = vpop.permute.xlu0 %1368
      %1370 = vrot.lane.b32.xlu0 %v979, 28
      %v1371 = vpop.permute.xlu0 %1370
      %1372 = vrot.lane.b32.xlu0 %v991, 28
      %v1373 = vpop.permute.xlu0 %1372
      %1374 = vrot.lane.b32.xlu0 %v1003, 28
      %v1375 = vpop.permute.xlu0 %1374
      %1376 = vrot.lane.b32.xlu0 %v1015, 28
      %v1377 = vpop.permute.xlu0 %1376
      %1378 = vrot.lane.b32.xlu0 %v1027, 28
      %v1379 = vpop.permute.xlu0 %1378
      %1380 = vrot.lane.b32.xlu0 %v1039, 28
      %v1381 = vpop.permute.xlu0 %1380
      %1382 = vrot.lane.b32.xlu0 %v1051, 28
      %v1383 = vpop.permute.xlu0 %1382
      %1384 = vrot.lane.b32.xlu0 %v1063, 28
      %v1385 = vpop.permute.xlu0 %1384
      %1386 = vrot.lane.b32.xlu0 %v1075, 28
      %v1387 = vpop.permute.xlu0 %1386
      %1388 = vrot.lane.b32.xlu0 %v1240, 28
      %v1389 = vpop.permute.xlu0 %1388
      %1390 = vrot.lane.b32.xlu0 %v1359, 28
      %v1391 = vpop.permute.xlu0 %1390
      %v1392 = vrot.slane %v1312, 1
      %v1393 = vrot.slane %v1347, 1
      %v1394 = vsel %vm1108, %v1392, %v1393
      %1395 = vrot.lane.b32.xlu0 %v1117, 32
      %v1396 = vpop.permute.xlu0 %1395
      %1397 = vrot.lane.b32.xlu0 %v1120, 32
      %v1398 = vpop.permute.xlu0 %1397
      %1399 = vrot.lane.b32.xlu0 %v1123, 32
      %v1400 = vpop.permute.xlu0 %1399
      %1401 = vrot.lane.b32.xlu0 %v1126, 32
      %v1402 = vpop.permute.xlu0 %1401
      %1403 = vrot.lane.b32.xlu0 %v1129, 32
      %v1404 = vpop.permute.xlu0 %1403
      %1405 = vrot.lane.b32.xlu0 %v1132, 32
      %v1406 = vpop.permute.xlu0 %1405
      %1407 = vrot.lane.b32.xlu0 %v1135, 32
      %v1408 = vpop.permute.xlu0 %1407
      %1409 = vrot.lane.b32.xlu0 %v1138, 32
      %v1410 = vpop.permute.xlu0 %1409
      %1411 = vrot.lane.b32.xlu0 %v1141, 32
      %v1412 = vpop.permute.xlu0 %1411
      %1413 = vrot.lane.b32.xlu0 %v1144, 32
      %v1414 = vpop.permute.xlu0 %1413
      %1415 = vrot.lane.b32.xlu0 %v1147, 32
      %v1416 = vpop.permute.xlu0 %1415
      %1417 = vrot.lane.b32.xlu0 %v1150, 32
      %v1418 = vpop.permute.xlu0 %1417
      %1419 = vrot.lane.b32.xlu0 %v1153, 32
      %v1420 = vpop.permute.xlu0 %1419
      %1421 = vrot.lane.b32.xlu0 %v1156, 32
      %v1422 = vpop.permute.xlu0 %1421
      %1423 = vrot.lane.b32.xlu0 %v1275, 32
      %v1424 = vpop.permute.xlu0 %1423
      %1425 = vrot.lane.b32.xlu0 %v1394, 32
      %v1426 = vpop.permute.xlu0 %1425
      %vm1427 = vcmask 31744
      %v1429 = vsel %vm1427, %v819, %v1077
      %v1431 = vsel %vm1427, %v820, %v1079
      %v1433 = vsel %vm1427, %v821, %v1081
      %v1435 = vsel %vm1427, %v822, %v1083
      %v1437 = vsel %vm1427, %v823, %v1085
      %v1439 = vsel %vm1427, %v824, %v1087
      %v1441 = vsel %vm1427, %v825, %v1089
      %v1443 = vsel %vm1427, %v826, %v1091
      %v1445 = vsel %vm1427, %v827, %v1093
      %v1447 = vsel %vm1427, %v828, %v1095
      %v1449 = vsel %vm1427, %v829, %v1097
      %v1451 = vsel %vm1427, %v830, %v1099
      %v1453 = vsel %vm1427, %v831, %v1101
      %v1455 = vsel %vm1427, %v832, %v1103
      %v1457 = vsel %vm1427, %v833, %v1105
      %v1459 = vsel %vm1427, %v834, %v1107
      %vm1460 = vcmask 64512
      %v1462 = vsel %vm1460, %v1429, %v1158
      %v1464 = vsel %vm1460, %v1431, %v1160
      %v1466 = vsel %vm1460, %v1433, %v1162
      %v1468 = vsel %vm1460, %v1435, %v1164
      %v1470 = vsel %vm1460, %v1437, %v1166
      %v1472 = vsel %vm1460, %v1439, %v1168
      %v1474 = vsel %vm1460, %v1441, %v1170
      %v1476 = vsel %vm1460, %v1443, %v1172
      %v1478 = vsel %vm1460, %v1445, %v1174
      %v1480 = vsel %vm1460, %v1447, %v1176
      %v1482 = vsel %vm1460, %v1449, %v1178
      %v1484 = vsel %vm1460, %v1451, %v1180
      %v1486 = vsel %vm1460, %v1453, %v1182
      %v1488 = vsel %vm1460, %v1455, %v1184
      %v1490 = vsel %vm1460, %v1457, %v1186
      %v1492 = vsel %vm1460, %v1459, %v1188
      %vm1493 = vcmask 97280
      %v1495 = vsel %vm1493, %v1462, %v1195
      %v1497 = vsel %vm1493, %v1464, %v1197
      %v1499 = vsel %vm1493, %v1466, %v1199
      %v1501 = vsel %vm1493, %v1468, %v1201
      %v1503 = vsel %vm1493, %v1470, %v1203
      %v1505 = vsel %vm1493, %v1472, %v1205
      %v1507 = vsel %vm1493, %v1474, %v1207
      %v1509 = vsel %vm1493, %v1476, %v1209
      %v1511 = vsel %vm1493, %v1478, %v1211
      %v1513 = vsel %vm1493, %v1480, %v1213
      %v1515 = vsel %vm1493, %v1482, %v1215
      %v1517 = vsel %vm1493, %v1484, %v1217
      %v1519 = vsel %vm1493, %v1486, %v1219
      %v1521 = vsel %vm1493, %v1488, %v1221
      %v1523 = vsel %vm1493, %v1490, %v1223
      %v1525 = vsel %vm1493, %v1492, %v1225
      %vm1526 = vcmask 130048
      %v1528 = vsel %vm1526, %v1495, %v1242
      %v1530 = vsel %vm1526, %v1497, %v1244
      %v1532 = vsel %vm1526, %v1499, %v1246
      %v1534 = vsel %vm1526, %v1501, %v1248
      %v1536 = vsel %vm1526, %v1503, %v1250
      %v1538 = vsel %vm1526, %v1505, %v1252
      %v1540 = vsel %vm1526, %v1507, %v1254
      %v1542 = vsel %vm1526, %v1509, %v1256
      %v1544 = vsel %vm1526, %v1511, %v1258
      %v1546 = vsel %vm1526, %v1513, %v1260
      %v1548 = vsel %vm1526, %v1515, %v1262
      %v1550 = vsel %vm1526, %v1517, %v1264
      %v1552 = vsel %vm1526, %v1519, %v1266
      %v1554 = vsel %vm1526, %v1521, %v1268
      %v1556 = vsel %vm1526, %v1523, %v1270
      %v1558 = vsel %vm1526, %v1525, %v1272
      %vm1559 = vcmask 162816
      %v1561 = vsel %vm1559, %v1528, %v1277
      %v1563 = vsel %vm1559, %v1530, %v1279
      %v1565 = vsel %vm1559, %v1532, %v1281
      %v1567 = vsel %vm1559, %v1534, %v1283
      %v1569 = vsel %vm1559, %v1536, %v1285
      %v1571 = vsel %vm1559, %v1538, %v1287
      %v1573 = vsel %vm1559, %v1540, %v1289
      %v1575 = vsel %vm1559, %v1542, %v1291
      %v1577 = vsel %vm1559, %v1544, %v1293
      %v1579 = vsel %vm1559, %v1546, %v1295
      %v1581 = vsel %vm1559, %v1548, %v1297
      %v1583 = vsel %vm1559, %v1550, %v1299
      %v1585 = vsel %vm1559, %v1552, %v1301
      %v1587 = vsel %vm1559, %v1554, %v1303
      %v1589 = vsel %vm1559, %v1556, %v1305
      %v1591 = vsel %vm1559, %v1558, %v1307
      %vm1592 = vcmask 195584
      %v1594 = vsel %vm1592, %v1561, %v1314
      %v1596 = vsel %vm1592, %v1563, %v1316
      %v1598 = vsel %vm1592, %v1565, %v1318
      %v1600 = vsel %vm1592, %v1567, %v1320
      %v1602 = vsel %vm1592, %v1569, %v1322
      %v1604 = vsel %vm1592, %v1571, %v1324
      %v1606 = vsel %vm1592, %v1573, %v1326
      %v1608 = vsel %vm1592, %v1575, %v1328
      %v1610 = vsel %vm1592, %v1577, %v1330
      %v1612 = vsel %vm1592, %v1579, %v1332
      %v1614 = vsel %vm1592, %v1581, %v1334
      %v1616 = vsel %vm1592, %v1583, %v1336
      %v1618 = vsel %vm1592, %v1585, %v1338
      %v1620 = vsel %vm1592, %v1587, %v1340
      %v1622 = vsel %vm1592, %v1589, %v1342
      %v1624 = vsel %vm1592, %v1591, %v1344
      %vm1625 = vcmask 228352
      %v1627 = vsel %vm1625, %v1594, %v1361
      %v1629 = vsel %vm1625, %v1596, %v1363
      %v1631 = vsel %vm1625, %v1598, %v1365
      %v1633 = vsel %vm1625, %v1600, %v1367
      %v1635 = vsel %vm1625, %v1602, %v1369
      %v1637 = vsel %vm1625, %v1604, %v1371
      %v1639 = vsel %vm1625, %v1606, %v1373
      %v1641 = vsel %vm1625, %v1608, %v1375
      %v1643 = vsel %vm1625, %v1610, %v1377
      %v1645 = vsel %vm1625, %v1612, %v1379
      %v1647 = vsel %vm1625, %v1614, %v1381
      %v1649 = vsel %vm1625, %v1616, %v1383
      %v1651 = vsel %vm1625, %v1618, %v1385
      %v1653 = vsel %vm1625, %v1620, %v1387
      %v1655 = vsel %vm1625, %v1622, %v1389
      %v1657 = vsel %vm1625, %v1624, %v1391
      %vm1658 = vcmask 261120
      %v1660 = vsel %vm1658, %v1627, %v1396
      %v1662 = vsel %vm1658, %v1629, %v1398
      %v1664 = vsel %vm1658, %v1631, %v1400
      %v1666 = vsel %vm1658, %v1633, %v1402
      %v1668 = vsel %vm1658, %v1635, %v1404
      %v1670 = vsel %vm1658, %v1637, %v1406
      %v1672 = vsel %vm1658, %v1639, %v1408
      %v1674 = vsel %vm1658, %v1641, %v1410
      %v1676 = vsel %vm1658, %v1643, %v1412
      %v1678 = vsel %vm1658, %v1645, %v1414
      %v1680 = vsel %vm1658, %v1647, %v1416
      %v1682 = vsel %vm1658, %v1649, %v1418
      %v1684 = vsel %vm1658, %v1651, %v1420
      %v1686 = vsel %vm1658, %v1653, %v1422
      %v1688 = vsel %vm1658, %v1655, %v1424
      %v1690 = vsel %vm1658, %v1657, %v1426
      %v1691 = vld [vmem:[%s1] sm:$0xf]
      %v1692 = vld [vmem:[%s1 + $0x4] sm:$0xf]
      %v1693 = vld [vmem:[%s1 + $0x8] sm:$0xf]
      %v1694 = vld [vmem:[%s1 + $0xc] sm:$0xf]
      %v1695 = vld [vmem:[%s1 + $0x10] sm:$0x3]
      %v1696 = vld [vmem:[%s2] sm:$0x1]
      %v1698 = vperm.slane %v1696, 0
      %v1705 = vunpack.c.l.b16 %v1691
      %v1706 = vunpack.c.l.b16 %v1692
      %v1707 = vunpack.c.l.b16 %v1693
      %v1708 = vunpack.c.l.b16 %v1694
      %v1709 = vunpack.c.l.b16 %v1695
      %v1710 = vpack.c.b16 %v1706, %v1705
      %v1711 = vpack.c.b16 %v1708, %v1707
      %v1712 = vpack.c.b16 %v1709, %v1709
      %vm1715 = vcmask 293888
      %v1716 = vsel %vm1715, %v1660, 0
      %v1718 = vsel %vm1715, %v1662, 0
      %v1720 = vsel %vm1715, %v1664, 0
      %v1722 = vsel %vm1715, %v1666, 0
      %v1724 = vsel %vm1715, %v1668, 0
      %v1726 = vsel %vm1715, %v1670, 0
      %v1728 = vsel %vm1715, %v1672, 0
      %v1730 = vsel %vm1715, %v1674, 0
      %v1732 = vsel %vm1715, %v1676, 0
      %v1734 = vsel %vm1715, %v1678, 0
      %v1736 = vsel %vm1715, %v1680, 0
      %v1738 = vsel %vm1715, %v1682, 0
      %v1740 = vsel %vm1715, %v1684, 0
      %v1742 = vsel %vm1715, %v1686, 0
      %v1744 = vsel %vm1715, %v1688, 0
      %v1746 = vsel %vm1715, %v1690, 0
      %vm1748 = vcmask 1041408
      %v1750 = vsel %vm1748, %v1712, 0
      %1752 = vmatpush.bf16.msra.mxu0 0
      %1753 = vmatpush.bf16.msra.mxu0 0
      %1754 = vmatpush.bf16.msra.mxu0 0
      %1755 = vmatpush.bf16.msra.mxu0 0
      %1756 = vmatpush.bf16.msra.mxu0 0
      %1757 = vmatpush.bf16.msra.mxu0 %v1750
      %1758 = vmatpush.bf16.msra.mxu0 %v1711
      %1759 = vmatpush.bf16.msra.mxu0 %v1710
      %1760 = vmatmul.bf16.gmra.mxu0 %v1716
      %v1761 = vpop.f32.mrf.mxu0
      %v1762 = vadd.f32 %v1698, %v1761
      %v1763 = vpop.f32.mrf.mxu0
      %v1764 = vadd.f32 %v1698, %v1763
      %1765 = vmatmul.bf16.gmra.mxu0 %v1718
      %v1766 = vpop.f32.mrf.mxu0
      %v1767 = vadd.f32 %v1698, %v1766
      %v1768 = vpop.f32.mrf.mxu0
      %v1769 = vadd.f32 %v1698, %v1768
      %1770 = vmatmul.bf16.gmra.mxu0 %v1720
      %v1771 = vpop.f32.mrf.mxu0
      %v1772 = vadd.f32 %v1698, %v1771
      %v1773 = vpop.f32.mrf.mxu0
      %v1774 = vadd.f32 %v1698, %v1773
      %1775 = vmatmul.bf16.gmra.mxu0 %v1722
      %v1776 = vpop.f32.mrf.mxu0
      %v1777 = vadd.f32 %v1698, %v1776
      %v1778 = vpop.f32.mrf.mxu0
      %v1779 = vadd.f32 %v1698, %v1778
      %1780 = vmatmul.bf16.gmra.mxu0 %v1724
      %v1781 = vpop.f32.mrf.mxu0
      %v1782 = vadd.f32 %v1698, %v1781
      %v1783 = vpop.f32.mrf.mxu0
      %v1784 = vadd.f32 %v1698, %v1783
      %1785 = vmatmul.bf16.gmra.mxu0 %v1726
      %v1786 = vpop.f32.mrf.mxu0
      %v1787 = vadd.f32 %v1698, %v1786
      %v1788 = vpop.f32.mrf.mxu0
      %v1789 = vadd.f32 %v1698, %v1788
      %1790 = vmatmul.bf16.gmra.mxu0 %v1728
      %v1791 = vpop.f32.mrf.mxu0
      %v1792 = vadd.f32 %v1698, %v1791
      %v1793 = vpop.f32.mrf.mxu0
      %v1794 = vadd.f32 %v1698, %v1793
      %1795 = vmatmul.bf16.gmra.mxu0 %v1730
      %v1796 = vpop.f32.mrf.mxu0
      %v1797 = vadd.f32 %v1698, %v1796
      %v1798 = vpop.f32.mrf.mxu0
      %v1799 = vadd.f32 %v1698, %v1798
      %1800 = vmatmul.bf16.gmra.mxu0 %v1732
      %v1801 = vpop.f32.mrf.mxu0
      %v1802 = vadd.f32 %v1698, %v1801
      %v1803 = vpop.f32.mrf.mxu0
      %v1804 = vadd.f32 %v1698, %v1803
      %1805 = vmatmul.bf16.gmra.mxu0 %v1734
      %v1806 = vpop.f32.mrf.mxu0
      %v1807 = vadd.f32 %v1698, %v1806
      %v1808 = vpop.f32.mrf.mxu0
      %v1809 = vadd.f32 %v1698, %v1808
      %1810 = vmatmul.bf16.gmra.mxu0 %v1736
      %v1811 = vpop.f32.mrf.mxu0
      %v1812 = vadd.f32 %v1698, %v1811
      %v1813 = vpop.f32.mrf.mxu0
      %v1814 = vadd.f32 %v1698, %v1813
      %1815 = vmatmul.bf16.gmra.mxu0 %v1738
      %v1816 = vpop.f32.mrf.mxu0
      %v1817 = vadd.f32 %v1698, %v1816
      %v1818 = vpop.f32.mrf.mxu0
      %v1819 = vadd.f32 %v1698, %v1818
      %1820 = vmatmul.bf16.gmra.mxu0 %v1740
      %v1821 = vpop.f32.mrf.mxu0
      %v1822 = vadd.f32 %v1698, %v1821
      %v1823 = vpop.f32.mrf.mxu0
      %v1824 = vadd.f32 %v1698, %v1823
      %1825 = vmatmul.bf16.gmra.mxu0 %v1742
      %v1826 = vpop.f32.mrf.mxu0
      %v1827 = vadd.f32 %v1698, %v1826
      %v1828 = vpop.f32.mrf.mxu0
      %v1829 = vadd.f32 %v1698, %v1828
      %1830 = vmatmul.bf16.gmra.mxu0 %v1744
      %v1831 = vpop.f32.mrf.mxu0
      %v1832 = vadd.f32 %v1698, %v1831
      %v1833 = vpop.f32.mrf.mxu0
      %v1834 = vadd.f32 %v1698, %v1833
      %1835 = vmatmul.bf16.gmra.mxu0 %v1746
      %v1836 = vpop.f32.mrf.mxu0
      %v1837 = vadd.f32 %v1698, %v1836
      %v1838 = vpop.f32.mrf.mxu0
      %v1839 = vadd.f32 %v1698, %v1838
      %1840 = vdwg.mxu0
      %1841 = vxpose.xlu0.b32.start [1/16] %v1762, 128
      %1842 = vxpose.xlu0.b32.cont [2/16] %v1764, 128
      %1843 = vxpose.xlu0.b32.cont [3/16] %v1767, 128
      %1844 = vxpose.xlu0.b32.cont [4/16] %v1769, 128
      %1845 = vxpose.xlu0.b32.cont [5/16] %v1772, 128
      %1846 = vxpose.xlu0.b32.cont [6/16] %v1774, 128
      %1847 = vxpose.xlu0.b32.cont [7/16] %v1777, 128
      %1848 = vxpose.xlu0.b32.cont [8/16] %v1779, 128
      %1849 = vxpose.xlu0.b32.cont [9/16] %v1782, 128
      %1850 = vxpose.xlu0.b32.cont [10/16] %v1784, 128
      %1851 = vxpose.xlu0.b32.cont [11/16] %v1787, 128
      %1852 = vxpose.xlu0.b32.cont [12/16] %v1789, 128
      %1853 = vxpose.xlu0.b32.cont [13/16] %v1792, 128
      %1854 = vxpose.xlu0.b32.cont [14/16] %v1794, 128
      %1855 = vxpose.xlu0.b32.cont [15/16] %v1797, 128
      %1856 = vxpose.xlu0.b32.end [16/16] %v1799, 128
      %v1857 = vpop.trf.xlu0
      %v1858 = vpop.trf.xlu0
      %v1859 = vpop.trf.xlu0
      %v1860 = vpop.trf.xlu0
      %v1861 = vpop.trf.xlu0
      %v1862 = vpop.trf.xlu0
      %v1863 = vpop.trf.xlu0
      %v1864 = vpop.trf.xlu0
      %v1865 = vpop.trf.xlu0
      %v1866 = vpop.trf.xlu0
      %v1867 = vpop.trf.xlu0
      %v1868 = vpop.trf.xlu0
      %v1869 = vpop.trf.xlu0
      %v1870 = vpop.trf.xlu0
      %v1871 = vpop.trf.xlu0
      %v1872 = vpop.trf.xlu0
      %1873 = vxpose.xlu0.b32.start [1/16] %v1802, 128
      %1874 = vxpose.xlu0.b32.cont [2/16] %v1804, 128
      %1875 = vxpose.xlu0.b32.cont [3/16] %v1807, 128
      %1876 = vxpose.xlu0.b32.cont [4/16] %v1809, 128
      %1877 = vxpose.xlu0.b32.cont [5/16] %v1812, 128
      %1878 = vxpose.xlu0.b32.cont [6/16] %v1814, 128
      %1879 = vxpose.xlu0.b32.cont [7/16] %v1817, 128
      %1880 = vxpose.xlu0.b32.cont [8/16] %v1819, 128
      %1881 = vxpose.xlu0.b32.cont [9/16] %v1822, 128
      %1882 = vxpose.xlu0.b32.cont [10/16] %v1824, 128
      %1883 = vxpose.xlu0.b32.cont [11/16] %v1827, 128
      %1884 = vxpose.xlu0.b32.cont [12/16] %v1829, 128
      %1885 = vxpose.xlu0.b32.cont [13/16] %v1832, 128
      %1886 = vxpose.xlu0.b32.cont [14/16] %v1834, 128
      %1887 = vxpose.xlu0.b32.cont [15/16] %v1837, 128
      %1888 = vxpose.xlu0.b32.end [16/16] %v1839, 128
      %v1889 = vpop.trf.xlu0
      %v1890 = vpop.trf.xlu0
      %v1891 = vpop.trf.xlu0
      %v1892 = vpop.trf.xlu0
      %v1893 = vpop.trf.xlu0
      %v1894 = vpop.trf.xlu0
      %v1895 = vpop.trf.xlu0
      %v1896 = vpop.trf.xlu0
      %v1897 = vpop.trf.xlu0
      %v1898 = vpop.trf.xlu0
      %v1899 = vpop.trf.xlu0
      %v1900 = vpop.trf.xlu0
      %v1901 = vpop.trf.xlu0
      %v1902 = vpop.trf.xlu0
      %v1903 = vpop.trf.xlu0
      %v1904 = vpop.trf.xlu0
      %1905 = vst [vmem:[%s170] sm:$0xff] %v1857
      %1906 = vst [vmem:[%s170 + $0x8] sm:$0xff] %v1889
      %1907 = vst [vmem:[%s170 + $0x10] sm:$0xff] %v1858
      %1908 = vst [vmem:[%s170 + $0x18] sm:$0xff] %v1890
      %1909 = vst [vmem:[%s170 + $0x20] sm:$0xff] %v1859
      %1910 = vst [vmem:[%s170 + $0x28] sm:$0xff] %v1891
      %1911 = vst [vmem:[%s170 + $0x30] sm:$0xff] %v1860
      %1912 = vst [vmem:[%s170 + $0x38] sm:$0xff] %v1892
      %p1913 = scmp.lt.s32.totalorder %s14, 1
      %s1914 = scalar_select %p1913, %s14, 1
      %s1915 = smul.addr %s1914, 8
      %s1916 = smul.addr %s1915, 8
      %s1917 = scalar_lea.vmem %s3, %s1916
      // Predicated region
      $region33: #{conv_forward.1} parent=31 // pred_check
        %p1918 = pneg %p100
      $region34: #{conv_forward.1} parent=31 // pred_check_branch
        %1920 = sbr.rel (%p1918) target = $region36
      $region35: #{conv_forward.1} parent=31 // pred_region
        _
      $region36: #{conv_forward.1} parent=31 // pred_fallthru
        _
    $region32: #{conv_forward.1} parent=5 // pred_fallthru
      _
    %p1921 = scmp.le.s32.totalorder 2, %s9
    // Predicated region
    $region37: #{conv_forward.1} parent=5 // pred_check
      %p1922 = pneg %p1921
    $region38: #{conv_forward.1} parent=5 // pred_check_branch
      %1924 = sbr.rel (%p1922) target = $region40
    $region39: #{conv_forward.1} parent=5 // pred_region
      %s1925 = ssub.s32 %s9, 2
      // Predicated region
      $region41: #{conv_forward.1} parent=39 // pred_check
        %p1926 = pneg %p106
      $region42: #{conv_forward.1} parent=39 // pred_check_branch
        %1928 = sbr.rel (%p1926) target = $region44
      $region43: #{conv_forward.1} parent=39 // pred_region
        %p1929 = scmp.lt.s32.totalorder %s15, 1
        %s1930 = scalar_select %p1929, %s15, 1
        %s1931 = smul.addr %s1930, 8
        %s1932 = smul.addr %s1931, 8
        %s1933 = scalar_lea.vmem %s3, %s1932
      $region44: #{conv_forward.1} parent=39 // pred_fallthru
        _
    $region40: #{conv_forward.1} parent=5 // pred_fallthru
      _
  $region6: #{conv_forward.1} parent=0 // loop_footer
    %s13 = sadd.s32 1, %s9
  $region7: #{conv_forward.1} parent=0 // loop_footer_branch
    %8 = sbr.rel target = $region3
  $region8: #{conv_forward.1} parent=0 // loop_exit
    _

</llo_original>
